<compile_context>
chip_gen: v7x
topology: tpu7x:2x2x1
jax: 0.10.0
libtpu: 0.0.40
codegen_flags: <defaults>
</compile_context>

<pallas_src>
import functools
import math

import jax
import jax.numpy as jnp
from jax import lax
from jax.experimental import pallas as pl
from jax.experimental.pallas import tpu as pltpu

LANE = 128


def _round_up(n, m):
    return ((n + m - 1) // m) * m


# -----------------------------------------------------------------------------
# Pallas kernel: full ConvolutionBlock1 forward for a block of Bt batch rows.
# -----------------------------------------------------------------------------
def _block_kernel(x_ref, w1_ref, b1_ref, w2_ref, b2_ref, w3_ref, b3_ref,
                  o_ref, xpad_ref, *, L, K, P, D):
    # x_ref : (Nt, D)       unpadded input rows (Nt = Bt*L, D = d_model)
    # w1_ref: (K*Dp, Hp)    conv1 im2col weight (group block-diag expanded), bf16
    # w2_ref: (K*Hp, Dp)    conv2 im2col weight (channel shuffle folded in), bf16
    # w3_ref: (K*Dp, Dp)    conv3 im2col weight (channel shuffle folded in), bf16
    # b*_ref: (1, Cp)       lane-padded biases, f32
    # o_ref : (Nt, D)       unpadded output rows
    # xpad_ref: (Nt, Dp)    VMEM scratch for lane-padding the input in-kernel
    N, Dp = xpad_ref.shape

    # Row index within each length-L sequence.  pltpu.roll wraps rows across
    # sequence / batch boundaries; wrapped rows must read as zero (they stand
    # in for Conv1d's zero padding).  Masks are computed ONCE and reused by all
    # three convs (JAX does not CSE broadcasts).
    t = lax.broadcasted_iota(jnp.int32, (N, 1), 0) % L
    masks = {}
    for k in range(K):
        s = P - k
        if s > 0:
            masks[s] = t >= s
        elif s < 0:
            masks[s] = t < L + s

    def taps(act):
        # K row-shifted copies of `act` via sublane rolls (XLU slot, overlaps
        # MXU/VPU), zeroed where a tap crosses a sequence boundary.
        out = []
        for k in range(K):
            s = P - k
            if s == 0:
                out.append(act)
            else:
                xs = pltpu.roll(act, shift=s % N, axis=0)
                out.append(jnp.where(masks[s], xs, 0.0))
        return out

    def conv(act, w_ref, b_ref):
        # One grouped conv == ONE bf16 MXU matmul on a lane-aligned im2col
        # operand; f32 accumulation + f32 bias epilogue.
        im2col = jnp.concatenate(taps(act), axis=-1)            # (N, K*C)
        y = jnp.dot(im2col.astype(jnp.bfloat16), w_ref[...],
                    preferred_element_type=jnp.float32)
        return y + b_ref[...]

    # Lane-pad the narrow input block inside VMEM (the HBM input stays
    # unpadded -- no wrapper-side pad pass).
    xpad_ref[...] = jnp.zeros_like(xpad_ref)
    xpad_ref[:, :D] = x_ref[...]
    x = xpad_ref[...]

    h = jax.nn.gelu(conv(x, w1_ref, b1_ref), approximate=True)  # conv1 + GELU
    h = jax.nn.gelu(conv(h, w2_ref, b2_ref), approximate=True)  # conv2 + GELU
    y = conv(h, w3_ref, b3_ref)       # conv3; dropout == identity (eval mode)

    o_ref[...] = y[:, :D].astype(o_ref.dtype)


# -----------------------------------------------------------------------------
# One-time weight preparation (cache the result; do NOT rebuild per call).
# -----------------------------------------------------------------------------
def _grouped_to_dense(w, groups):
    """PyTorch grouped Conv1d weight (C_out, C_in/g, K) -> dense (K, C_in, C_out)."""
    c_out, ipg, k = w.shape
    c_in = ipg * groups
    opg = c_out // groups
    dense = jnp.zeros((k, c_in, c_out), dtype=w.dtype)
    for g in range(groups):
        blk = jnp.transpose(w[g * opg:(g + 1) * opg], (2, 1, 0))  # (K, ipg, opg)
        dense = dense.at[:, g * ipg:(g + 1) * ipg, g * opg:(g + 1) * opg].set(blk)
    return dense


def _shuffle_perm(num_channels, groups):
    """perm s.t. shuffled[:, j] = x[:, perm[j]] (matches module's view/transpose)."""
    cpg = num_channels // groups
    j = jnp.arange(num_channels)
    return (j % groups) * cpg + (j // groups)


def _im2col_weight(w_dense, c_in_p, c_out_p, dtype):
    """(K, C_in, C_out) dense tap weights -> lane-padded (K*c_in_p, c_out_p)."""
    k, c_in, c_out = w_dense.shape
    w = jnp.zeros((k, c_in_p, c_out_p), jnp.float32)
    w = w.at[:, :c_in, :c_out].set(w_dense.astype(jnp.float32))
    return w.astype(dtype).reshape(k * c_in_p, c_out_p)


def _pad_bias(b, c_p):
    return jnp.zeros((1, c_p), jnp.float32).at[0, :b.shape[0]].set(
        b.astype(jnp.float32))


def prepare_block_params(params, *, kernel_size, groups,
                         compute_dtype=jnp.bfloat16):
    """Block-diag expansion + channel-shuffle folding + lane padding + bf16 cast.
    Call ONCE; reuse the returned dict for every forward call."""
    K = kernel_size
    H = params["w1"].shape[0]
    D = params["w1"].shape[1] * groups
    assert D % groups == 0 and H % groups == 0
    assert D % 3 == 0 and H % 3 == 0   # channel_shuffle(groups=3) is hardcoded

    Dp = _round_up(D, LANE)
    Hp = _round_up(H, LANE)

    w1 = _grouped_to_dense(params["w1"], groups)            # (K, D, H)
    w2 = _grouped_to_dense(params["w2"], groups)            # (K, H, D)
    w3 = _grouped_to_dense(params["w3"], groups)            # (K, D, D)
    # Fold the fixed channel shuffle preceding conv2/conv3 into their
    # input-channel rows: shuffled @ W == h @ W[inv_perm, :].
    inv2 = jnp.argsort(_shuffle_perm(H, 3))
    inv3 = jnp.argsort(_shuffle_perm(D, 3))
    w2 = w2[:, inv2, :]
    w3 = w3[:, inv3, :]

    return {
        "w1": _im2col_weight(w1, Dp, Hp, compute_dtype),     # (K*Dp, Hp)
        "w2": _im2col_weight(w2, Hp, Dp, compute_dtype),     # (K*Hp, Dp)
        "w3": _im2col_weight(w3, Dp, Dp, compute_dtype),     # (K*Dp, Dp)
        "b1": _pad_bias(params["b1"], Hp),
        "b2": _pad_bias(params["b2"], Dp),
        "b3": _pad_bias(params["b3"], Dp),
        "K": K, "D": D, "H": H, "Dp": Dp, "Hp": Hp,
    }


# -----------------------------------------------------------------------------
# Wrapper: blocking, VMEM sizing and the pallas_call.
# -----------------------------------------------------------------------------
def _vmem_limit_bytes():
    try:
        cap = pltpu.get_tpu_info().vmem_capacity_bytes
    except Exception:
        cap = 64 * 1024 * 1024          # conservative (v7x-sized) fallback
    # ~75% of physical VMEM: ~48 MiB on v7x, ~96 MiB on v5e/v6e.
    return int(min(cap * 3 // 4, 100 * 1024 * 1024))


def _choose_blocking(B, L, target_rows):
    """Pick batch-elements-per-step (Bt) and the padded batch size.

    Guarantees (Bt*L) % 8 == 0 (no whole-batch fallback), targets ~target_rows
    rows per step, and keeps >= 2 grid steps whenever the batch allows it."""
    bt_unit = 8 // math.gcd(L, 8)                 # smallest sublane-aligned Bt
    total_units = -(-B // bt_unit)                # ceil(B / bt_unit)
    units_per_step = max(1, target_rows // (bt_unit * L))
    if total_units >= 2:                          # keep >= 2 steps (megacore)
        units_per_step = max(1, min(units_per_step, total_units // 2))
    units_per_step = min(units_per_step, total_units)
    Bt = units_per_step * bt_unit
    n_steps = -(-total_units // units_per_step)
    return Bt, n_steps * Bt


def convolution_block1(x, prep, *, kernel_size, groups):
    """x: (B, L, d_model) float32 -> (B, L, d_model). `prep` from prepare_block_params."""
    B, L, D = x.shape
    K, P = kernel_size, kernel_size // 2
    assert K % 2 == 1, "kernel_size must be odd (padding=K//2 keeps length L)"
    assert K == prep["K"] and D == prep["D"]
    Dp, Hp = prep["Dp"], prep["Hp"]

    vmem_limit = _vmem_limit_bytes()
    # Rough per-row f32 activation footprint (taps + im2col + matmul results),
    # used to cap rows-per-step under the VMEM budget.
    row_bytes = 4 * ((K + 2) * max(Hp, Dp) + Hp + 2 * Dp + 2 * D)
    w_bytes = 2 * (prep["w1"].size + prep["w2"].size + prep["w3"].size)  # bf16
    avail = max(vmem_limit - 2 * w_bytes, vmem_limit // 4)
    target_rows = max(8, min(1024, avail // (3 * row_bytes)))
    Bt, B_pad = _choose_blocking(B, L, target_rows)

    if B_pad > B:   # pad with whole zero sequences; sliced off below
        x = jnp.concatenate([x, jnp.zeros((B_pad - B, L, D), x.dtype)], axis=0)
    x2d = x.reshape(B_pad * L, D)
    Nt = Bt * L
    grid = (B_pad // Bt,)

    kernel = functools.partial(_block_kernel, L=L, K=K, P=P, D=D)

    def run(single_buffer_weights):
        def const(shape):
            # Grid-invariant weights/biases: fetched once, kept resident;
            # single-buffered to halve their VMEM footprint.
            if single_buffer_weights:
                return pl.BlockSpec(shape, lambda *_: (0,) * len(shape),
                                    pipeline_mode=pl.Buffered(1))
            return pl.BlockSpec(shape, lambda *_: (0,) * len(shape))

        return pl.pallas_call(
            kernel,
            out_shape=jax.ShapeDtypeStruct((B_pad * L, D), x.dtype),
            grid_spec=pltpu.PrefetchScalarGridSpec(
                num_scalar_prefetch=0,
                grid=grid,
                in_specs=[
                    pl.BlockSpec((Nt, D), lambda b: (b, 0)),
                    const(prep["w1"].shape), const(prep["b1"].shape),
                    const(prep["w2"].shape), const(prep["b2"].shape),
                    const(prep["w3"].shape), const(prep["b3"].shape),
                ],
                out_specs=pl.BlockSpec((Nt, D), lambda b: (b, 0)),
                scratch_shapes=[pltpu.VMEM((Nt, Dp), jnp.float32)],
            ),
            compiler_params=pltpu.CompilerParams(
                dimension_semantics=("parallel",),
                vmem_limit_bytes=vmem_limit,
            ),
        )(x2d, prep["w1"], prep["b1"], prep["w2"], prep["b2"],
          prep["w3"], prep["b3"])

    try:
        out2d = run(single_buffer_weights=hasattr(pl, "Buffered"))
    except Exception:
        out2d = run(single_buffer_weights=False)   # fall back to default buffering

    out = out2d.reshape(B_pad, L, D)
    return out[:B] if B_pad > B else out


# -----------------------------------------------------------------------------
# Pure-JAX reference (mirrors the PyTorch forward exactly, eval-mode dropout).
# -----------------------------------------------------------------------------
def _conv1d_grouped_ref(x_ncl, w, b, groups, pad):
    y = lax.conv_general_dilated(
        x_ncl, w, window_strides=(1,), padding=[(pad, pad)],
        dimension_numbers=("NCH", "OIH", "NCH"),
        feature_group_count=groups)
    return y + b[None, :, None]


def _channel_shuffle_ref(x, groups):
    B, C, L = x.shape
    cpg = C // groups
    return x.reshape(B, groups, cpg, L).transpose(0, 2, 1, 3).reshape(B, C, L)


def reference_forward(x, params, *, kernel_size, groups):
    P = kernel_size // 2
    t = jnp.transpose(x, (0, 2, 1))                                   # (B, D, L)
    t = jax.nn.gelu(_conv1d_grouped_ref(t, params["w1"], params["b1"], groups, P),
                    approximate=False)
    t = _channel_shuffle_ref(t, 3)
    t = jax.nn.gelu(_conv1d_grouped_ref(t, params["w2"], params["b2"], groups, P),
                    approximate=False)
    t = _channel_shuffle_ref(t, 3)
    t = _conv1d_grouped_ref(t, params["w3"], params["b3"], groups, P)  # dropout: eval
    return jnp.transpose(t, (0, 2, 1))


# -----------------------------------------------------------------------------
if __name__ == "__main__":
    B, L = 2, 16
    d_model, hidden_dim, kernel_size, groups = 12, 24, 3, 3

    key = jax.random.PRNGKey(0)
    ks = jax.random.split(key, 7)
    params = {
        "w1": 0.1 * jax.random.normal(ks[0], (hidden_dim, d_model // groups, kernel_size), jnp.float32),
        "b1": 0.1 * jax.random.normal(ks[1], (hidden_dim,), jnp.float32),
        "w2": 0.1 * jax.random.normal(ks[2], (d_model, hidden_dim // groups, kernel_size), jnp.float32),
        "b2": 0.1 * jax.random.normal(ks[3], (d_model,), jnp.float32),
        "w3": 0.1 * jax.random.normal(ks[4], (d_model, d_model // groups, kernel_size), jnp.float32),
        "b3": 0.1 * jax.random.normal(ks[5], (d_model,), jnp.float32),
    }
    x = jax.random.normal(ks[6], (B, L, d_model), jnp.float32)

    # Weight prep happens ONCE (cache this object across forward calls).
    prep = prepare_block_params(params, kernel_size=kernel_size, groups=groups)

    out = convolution_block1(x, prep, kernel_size=kernel_size, groups=groups)
    out = jax.block_until_ready(out)

    ref = reference_forward(x, params, kernel_size=kernel_size, groups=groups)
    assert out.shape == ref.shape == (B, L, d_model)
    err = float(jnp.max(jnp.abs(out - ref)))
    # bf16 MXU operands + tanh GELU vs exact-erf f32 reference -> relaxed tol.
    assert jnp.allclose(out, ref, atol=2e-2, rtol=2e-2), err

    print("KERNEL_OK")
</pallas_src>

<mosaic_0001>
module attributes {stable_mosaic.version = 11 : i64} {
  func.func @_block_kernel(%arg0: i32, %arg1: memref<16x12xf32, #tpu.memory_space<vmem>>, %arg2: memref<384x128xbf16, #tpu.memory_space<vmem>>, %arg3: memref<1x128xf32, #tpu.memory_space<vmem>>, %arg4: memref<384x128xbf16, #tpu.memory_space<vmem>>, %arg5: memref<1x128xf32, #tpu.memory_space<vmem>>, %arg6: memref<384x128xbf16, #tpu.memory_space<vmem>>, %arg7: memref<1x128xf32, #tpu.memory_space<vmem>>, %arg8: memref<16x12xf32, #tpu.memory_space<vmem>>, %arg9: memref<16x128xf32, #tpu.memory_space<vmem>>) attributes {dimension_semantics = [#tpu.dimension_semantics<parallel>], iteration_bounds = array<i64: 2>, scalar_prefetch = 0 : i64, scratch_operands = 1 : i64, tpu.core_type = #tpu.core_type<tc>, window_params = [{transform_indices = @transform_0, window_bounds = array<i64: 16, 12>}, {pipeline_mode = #tpu.pipeline_mode<synchronous>, transform_indices = @transform_1, window_bounds = array<i64: 384, 128>}, {pipeline_mode = #tpu.pipeline_mode<synchronous>, transform_indices = @transform_2, window_bounds = array<i64: 1, 128>}, {pipeline_mode = #tpu.pipeline_mode<synchronous>, transform_indices = @transform_3, window_bounds = array<i64: 384, 128>}, {pipeline_mode = #tpu.pipeline_mode<synchronous>, transform_indices = @transform_4, window_bounds = array<i64: 1, 128>}, {pipeline_mode = #tpu.pipeline_mode<synchronous>, transform_indices = @transform_5, window_bounds = array<i64: 384, 128>}, {pipeline_mode = #tpu.pipeline_mode<synchronous>, transform_indices = @transform_6, window_bounds = array<i64: 1, 128>}, {transform_indices = @transform_7, window_bounds = array<i64: 16, 12>}]} {
    %0 = tpu.iota {dimensions = array<i32: 0>} : vector<16x1xi32>
    %c16_i32 = arith.constant 16 : i32
    %c0_i32 = arith.constant 0 : i32
    %1 = arith.cmpi eq, %c16_i32, %c0_i32 : i32
    %c1_i32 = arith.constant 1 : i32
    %2 = arith.select %1, %c1_i32, %c16_i32 : i32
    %3 = vector.broadcast %2 : i32 to vector<16x1xi32>
    %4 = arith.remsi %0, %3 : vector<16x1xi32>
    %c0_i32_0 = arith.constant 0 : i32
    %5 = vector.broadcast %c0_i32_0 : i32 to vector<16x1xi32>
    %6 = arith.cmpi ne, %4, %5 : vector<16x1xi32>
    %c0_i32_1 = arith.constant 0 : i32
    %7 = vector.broadcast %c0_i32_1 : i32 to vector<16x1xi32>
    %8 = arith.cmpi slt, %4, %7 : vector<16x1xi32>
    %c0_i32_2 = arith.constant 0 : i32
    %9 = arith.cmpi slt, %2, %c0_i32_2 : i32
    %10 = vector.broadcast %9 : i1 to vector<16x1xi1>
    %11 = vector.broadcast %10 : vector<16x1xi1> to vector<16x1xi1>
    %12 = arith.xori %8, %11 : vector<16x1xi1>
    %13 = arith.andi %12, %6 : vector<16x1xi1>
    %14 = vector.broadcast %2 : i32 to vector<16x1xi32>
    %15 = arith.addi %4, %14 : vector<16x1xi32>
    %16 = arith.select %13, %15, %4 : vector<16x1xi1>, vector<16x1xi32>
    %c1_i32_3 = arith.constant 1 : i32
    %17 = vector.broadcast %c1_i32_3 : i32 to vector<16x1xi32>
    %18 = arith.cmpi sge, %16, %17 : vector<16x1xi32>
    %c15_i32 = arith.constant 15 : i32
    %19 = vector.broadcast %c15_i32 : i32 to vector<16x1xi32>
    %20 = arith.cmpi slt, %16, %19 : vector<16x1xi32>
    %cst = arith.constant 0.000000e+00 : f32
    %21 = vector.broadcast %cst : f32 to vector<16x128xf32>
    %c0 = arith.constant 0 : index
    %c0_4 = arith.constant 0 : index
    %22 = vector.load %arg9[%c0, %c0_4] : memref<16x128xf32, #tpu.memory_space<vmem>>, vector<16x128xf32>
    tpu.vector_store %arg9[%c0, %c0_4], %21 {strides = array<i32>} : memref<16x128xf32, #tpu.memory_space<vmem>>, vector<16x128xf32>,
    %c0_5 = arith.constant 0 : index
    %c0_6 = arith.constant 0 : index
    %23 = vector.load %arg1[%c0_5, %c0_6] : memref<16x12xf32, #tpu.memory_space<vmem>>, vector<16x12xf32>
    %c0_7 = arith.constant 0 : index
    %c0_8 = arith.constant 0 : index
    %24 = vector.load %arg9[%c0_7, %c0_8] : memref<16x128xf32, #tpu.memory_space<vmem>>, vector<16x12xf32>
    tpu.vector_store %arg9[%c0_7, %c0_8], %23 {strides = array<i32>} : memref<16x128xf32, #tpu.memory_space<vmem>>, vector<16x12xf32>,
    %c0_9 = arith.constant 0 : index
    %c0_10 = arith.constant 0 : index
    %25 = vector.load %arg9[%c0_9, %c0_10] : memref<16x128xf32, #tpu.memory_space<vmem>>, vector<16x128xf32>
    %c1_i32_11 = arith.constant 1 : i32
    %26 = tpu.dynamic_rotate %25 by %c1_i32_11 dim 0 : vector<16x128xf32>, i32 -> vector<16x128xf32>
    %cst_12 = arith.constant 0.000000e+00 : f32
    %27 = vector.shape_cast %18 : vector<16x1xi1> to vector<16x1xi1>
    %28 = vector.broadcast %27 : vector<16x1xi1> to vector<16x128xi1>
    %29 = vector.broadcast %cst_12 : f32 to vector<16x128xf32>
    %30 = arith.select %28, %26, %29 : vector<16x128xi1>, vector<16x128xf32>
    %c15_i32_13 = arith.constant 15 : i32
    %31 = tpu.dynamic_rotate %25 by %c15_i32_13 dim 0 : vector<16x128xf32>, i32 -> vector<16x128xf32>
    %cst_14 = arith.constant 0.000000e+00 : f32
    %32 = vector.shape_cast %20 : vector<16x1xi1> to vector<16x1xi1>
    %33 = vector.broadcast %32 : vector<16x1xi1> to vector<16x128xi1>
    %34 = vector.broadcast %cst_14 : f32 to vector<16x128xf32>
    %35 = arith.select %33, %31, %34 : vector<16x128xi1>, vector<16x128xf32>
    %36 = tpu.concatenate %30, %25, %35 in 1 : vector<16x128xf32>, vector<16x128xf32>, vector<16x128xf32> -> vector<16x384xf32>
    %37 = arith.truncf %36 : vector<16x384xf32> to vector<16x384xbf16>
    %c0_15 = arith.constant 0 : index
    %c0_16 = arith.constant 0 : index
    %38 = vector.load %arg2[%c0_15, %c0_16] : memref<384x128xbf16, #tpu.memory_space<vmem>>, vector<384x128xbf16>
    %cst_17 = arith.constant dense<0.000000e+00> : vector<16x128xf32>
    %39 = tpu.matmul %37, %38, %cst_17 {dimension_numbers = #tpu.dot_dimension_numbers<[1], [0], [0], [1], [0, 0, 1, 1], [], []>} : vector<16x384xbf16>, vector<384x128xbf16>, vector<16x128xf32> -> vector<16x128xf32>
    %c0_18 = arith.constant 0 : index
    %c0_19 = arith.constant 0 : index
    %40 = vector.load %arg3[%c0_18, %c0_19] : memref<1x128xf32, #tpu.memory_space<vmem>>, vector<1x128xf32>
    %41 = vector.broadcast %40 : vector<1x128xf32> to vector<16x128xf32>
    %42 = arith.addf %39, %41 : vector<16x128xf32>
    %43 = arith.mulf %42, %42 : vector<16x128xf32>
    %44 = arith.mulf %42, %43 : vector<16x128xf32>
    %cst_20 = arith.constant 4.471500e-02 : f32
    %45 = vector.broadcast %cst_20 : f32 to vector<16x128xf32>
    %46 = arith.mulf %45, %44 : vector<16x128xf32>
    %47 = arith.addf %42, %46 : vector<16x128xf32>
    %cst_21 = arith.constant 0.797884583 : f32
    %48 = vector.broadcast %cst_21 : f32 to vector<16x128xf32>
    %49 = arith.mulf %48, %47 : vector<16x128xf32>
    %50 = math.tanh %49 : vector<16x128xf32>
    %cst_22 = arith.constant 1.000000e+00 : f32
    %51 = vector.broadcast %cst_22 : f32 to vector<16x128xf32>
    %52 = arith.addf %51, %50 : vector<16x128xf32>
    %cst_23 = arith.constant 5.000000e-01 : f32
    %53 = vector.broadcast %cst_23 : f32 to vector<16x128xf32>
    %54 = arith.mulf %53, %52 : vector<16x128xf32>
    %55 = arith.mulf %42, %54 : vector<16x128xf32>
    %c1_i32_24 = arith.constant 1 : i32
    %56 = tpu.dynamic_rotate %55 by %c1_i32_24 dim 0 : vector<16x128xf32>, i32 -> vector<16x128xf32>
    %cst_25 = arith.constant 0.000000e+00 : f32
    %57 = vector.shape_cast %18 : vector<16x1xi1> to vector<16x1xi1>
    %58 = vector.broadcast %57 : vector<16x1xi1> to vector<16x128xi1>
    %59 = vector.broadcast %cst_25 : f32 to vector<16x128xf32>
    %60 = arith.select %58, %56, %59 : vector<16x128xi1>, vector<16x128xf32>
    %c15_i32_26 = arith.constant 15 : i32
    %61 = tpu.dynamic_rotate %55 by %c15_i32_26 dim 0 : vector<16x128xf32>, i32 -> vector<16x128xf32>
    %cst_27 = arith.constant 0.000000e+00 : f32
    %62 = vector.shape_cast %20 : vector<16x1xi1> to vector<16x1xi1>
    %63 = vector.broadcast %62 : vector<16x1xi1> to vector<16x128xi1>
    %64 = vector.broadcast %cst_27 : f32 to vector<16x128xf32>
    %65 = arith.select %63, %61, %64 : vector<16x128xi1>, vector<16x128xf32>
    %66 = tpu.concatenate %60, %55, %65 in 1 : vector<16x128xf32>, vector<16x128xf32>, vector<16x128xf32> -> vector<16x384xf32>
    %67 = arith.truncf %66 : vector<16x384xf32> to vector<16x384xbf16>
    %c0_28 = arith.constant 0 : index
    %c0_29 = arith.constant 0 : index
    %68 = vector.load %arg4[%c0_28, %c0_29] : memref<384x128xbf16, #tpu.memory_space<vmem>>, vector<384x128xbf16>
    %cst_30 = arith.constant dense<0.000000e+00> : vector<16x128xf32>
    %69 = tpu.matmul %67, %68, %cst_30 {dimension_numbers = #tpu.dot_dimension_numbers<[1], [0], [0], [1], [0, 0, 1, 1], [], []>} : vector<16x384xbf16>, vector<384x128xbf16>, vector<16x128xf32> -> vector<16x128xf32>
    %c0_31 = arith.constant 0 : index
    %c0_32 = arith.constant 0 : index
    %70 = vector.load %arg5[%c0_31, %c0_32] : memref<1x128xf32, #tpu.memory_space<vmem>>, vector<1x128xf32>
    %71 = vector.broadcast %70 : vector<1x128xf32> to vector<16x128xf32>
    %72 = arith.addf %69, %71 : vector<16x128xf32>
    %73 = arith.mulf %72, %72 : vector<16x128xf32>
    %74 = arith.mulf %72, %73 : vector<16x128xf32>
    %cst_33 = arith.constant 4.471500e-02 : f32
    %75 = vector.broadcast %cst_33 : f32 to vector<16x128xf32>
    %76 = arith.mulf %75, %74 : vector<16x128xf32>
    %77 = arith.addf %72, %76 : vector<16x128xf32>
    %cst_34 = arith.constant 0.797884583 : f32
    %78 = vector.broadcast %cst_34 : f32 to vector<16x128xf32>
    %79 = arith.mulf %78, %77 : vector<16x128xf32>
    %80 = math.tanh %79 : vector<16x128xf32>
    %cst_35 = arith.constant 1.000000e+00 : f32
    %81 = vector.broadcast %cst_35 : f32 to vector<16x128xf32>
    %82 = arith.addf %81, %80 : vector<16x128xf32>
    %cst_36 = arith.constant 5.000000e-01 : f32
    %83 = vector.broadcast %cst_36 : f32 to vector<16x128xf32>
    %84 = arith.mulf %83, %82 : vector<16x128xf32>
    %85 = arith.mulf %72, %84 : vector<16x128xf32>
    %c1_i32_37 = arith.constant 1 : i32
    %86 = tpu.dynamic_rotate %85 by %c1_i32_37 dim 0 : vector<16x128xf32>, i32 -> vector<16x128xf32>
    %cst_38 = arith.constant 0.000000e+00 : f32
    %87 = vector.shape_cast %18 : vector<16x1xi1> to vector<16x1xi1>
    %88 = vector.broadcast %87 : vector<16x1xi1> to vector<16x128xi1>
    %89 = vector.broadcast %cst_38 : f32 to vector<16x128xf32>
    %90 = arith.select %88, %86, %89 : vector<16x128xi1>, vector<16x128xf32>
    %c15_i32_39 = arith.constant 15 : i32
    %91 = tpu.dynamic_rotate %85 by %c15_i32_39 dim 0 : vector<16x128xf32>, i32 -> vector<16x128xf32>
    %cst_40 = arith.constant 0.000000e+00 : f32
    %92 = vector.shape_cast %20 : vector<16x1xi1> to vector<16x1xi1>
    %93 = vector.broadcast %92 : vector<16x1xi1> to vector<16x128xi1>
    %94 = vector.broadcast %cst_40 : f32 to vector<16x128xf32>
    %95 = arith.select %93, %91, %94 : vector<16x128xi1>, vector<16x128xf32>
    %96 = tpu.concatenate %90, %85, %95 in 1 : vector<16x128xf32>, vector<16x128xf32>, vector<16x128xf32> -> vector<16x384xf32>
    %97 = arith.truncf %96 : vector<16x384xf32> to vector<16x384xbf16>
    %c0_41 = arith.constant 0 : index
    %c0_42 = arith.constant 0 : index
    %98 = vector.load %arg6[%c0_41, %c0_42] : memref<384x128xbf16, #tpu.memory_space<vmem>>, vector<384x128xbf16>
    %cst_43 = arith.constant dense<0.000000e+00> : vector<16x128xf32>
    %99 = tpu.matmul %97, %98, %cst_43 {dimension_numbers = #tpu.dot_dimension_numbers<[1], [0], [0], [1], [0, 0, 1, 1], [], []>} : vector<16x384xbf16>, vector<384x128xbf16>, vector<16x128xf32> -> vector<16x128xf32>
    %c0_44 = arith.constant 0 : index
    %c0_45 = arith.constant 0 : index
    %100 = vector.load %arg7[%c0_44, %c0_45] : memref<1x128xf32, #tpu.memory_space<vmem>>, vector<1x128xf32>
    %101 = vector.broadcast %100 : vector<1x128xf32> to vector<16x128xf32>
    %102 = arith.addf %99, %101 : vector<16x128xf32>
    %103 = vector.extract_strided_slice %102 {offsets = [0, 0], sizes = [16, 12], strides = [1, 1]} : vector<16x128xf32> to vector<16x12xf32>
    %c0_46 = arith.constant 0 : index
    %c0_47 = arith.constant 0 : index
    %104 = vector.load %arg8[%c0_46, %c0_47] : memref<16x12xf32, #tpu.memory_space<vmem>>, vector<16x12xf32>
    tpu.vector_store %arg8[%c0_46, %c0_47], %103 {strides = array<i32>} : memref<16x12xf32, #tpu.memory_space<vmem>>, vector<16x12xf32>,
    return
  }
  func.func @transform_0(%arg0: i32) -> (i32, i32) {
    %c0_i32 = arith.constant 0 : i32
    %c0_i32_0 = arith.constant 0 : i32
    return %arg0, %c0_i32 : i32, i32
  }
  func.func @transform_1(%arg0: i32) -> (i32, i32) {
    %c0_i32 = arith.constant 0 : i32
    %c0_i32_0 = arith.constant 0 : i32
    %c0_i32_1 = arith.constant 0 : i32
    return %c0_i32, %c0_i32_0 : i32, i32
  }
  func.func @transform_2(%arg0: i32) -> (i32, i32) {
    %c0_i32 = arith.constant 0 : i32
    %c0_i32_0 = arith.constant 0 : i32
    %c0_i32_1 = arith.constant 0 : i32
    return %c0_i32, %c0_i32_0 : i32, i32
  }
  func.func @transform_3(%arg0: i32) -> (i32, i32) {
    %c0_i32 = arith.constant 0 : i32
    %c0_i32_0 = arith.constant 0 : i32
    %c0_i32_1 = arith.constant 0 : i32
    return %c0_i32, %c0_i32_0 : i32, i32
  }
  func.func @transform_4(%arg0: i32) -> (i32, i32) {
    %c0_i32 = arith.constant 0 : i32
    %c0_i32_0 = arith.constant 0 : i32
    %c0_i32_1 = arith.constant 0 : i32
    return %c0_i32, %c0_i32_0 : i32, i32
  }
  func.func @transform_5(%arg0: i32) -> (i32, i32) {
    %c0_i32 = arith.constant 0 : i32
    %c0_i32_0 = arith.constant 0 : i32
    %c0_i32_1 = arith.constant 0 : i32
    return %c0_i32, %c0_i32_0 : i32, i32
  }
  func.func @transform_6(%arg0: i32) -> (i32, i32) {
    %c0_i32 = arith.constant 0 : i32
    %c0_i32_0 = arith.constant 0 : i32
    %c0_i32_1 = arith.constant 0 : i32
    return %c0_i32, %c0_i32_0 : i32, i32
  }
  func.func @transform_7(%arg0: i32) -> (i32, i32) {
    %c0_i32 = arith.constant 0 : i32
    %c0_i32_0 = arith.constant 0 : i32
    return %arg0, %c0_i32 : i32, i32
  }
}

module attributes {stable_mosaic.version = 11 : i64} {
  func.func @_block_kernel(%arg0: i32, %arg1: memref<16x12xf32, #tpu.memory_space<vmem>>, %arg2: memref<384x128xbf16, #tpu.memory_space<vmem>>, %arg3: memref<1x128xf32, #tpu.memory_space<vmem>>, %arg4: memref<384x128xbf16, #tpu.memory_space<vmem>>, %arg5: memref<1x128xf32, #tpu.memory_space<vmem>>, %arg6: memref<384x128xbf16, #tpu.memory_space<vmem>>, %arg7: memref<1x128xf32, #tpu.memory_space<vmem>>, %arg8: memref<16x12xf32, #tpu.memory_space<vmem>>, %arg9: memref<16x128xf32, #tpu.memory_space<vmem>>) attributes {dimension_semantics = [#tpu.dimension_semantics<parallel>], iteration_bounds = array<i64: 2>, scalar_prefetch = 0 : i64, scratch_operands = 1 : i64, tpu.core_type = #tpu.core_type<tc>, window_params = [{transform_indices = @transform_0, window_bounds = array<i64: 16, 12>}, {pipeline_mode = #tpu.pipeline_mode<synchronous>, transform_indices = @transform_1, window_bounds = array<i64: 384, 128>}, {pipeline_mode = #tpu.pipeline_mode<synchronous>, transform_indices = @transform_2, window_bounds = array<i64: 1, 128>}, {pipeline_mode = #tpu.pipeline_mode<synchronous>, transform_indices = @transform_3, window_bounds = array<i64: 384, 128>}, {pipeline_mode = #tpu.pipeline_mode<synchronous>, transform_indices = @transform_4, window_bounds = array<i64: 1, 128>}, {pipeline_mode = #tpu.pipeline_mode<synchronous>, transform_indices = @transform_5, window_bounds = array<i64: 384, 128>}, {pipeline_mode = #tpu.pipeline_mode<synchronous>, transform_indices = @transform_6, window_bounds = array<i64: 1, 128>}, {transform_indices = @transform_7, window_bounds = array<i64: 16, 12>}]} {
    %0 = tpu.iota {dimensions = array<i32: 0>} : vector<16x1xi32>
    %c16_i32 = arith.constant 16 : i32
    %c0_i32 = arith.constant 0 : i32
    %1 = arith.cmpi eq, %c16_i32, %c0_i32 : i32
    %c1_i32 = arith.constant 1 : i32
    %2 = arith.select %1, %c1_i32, %c16_i32 : i32
    %3 = vector.broadcast %2 : i32 to vector<16x1xi32>
    %4 = arith.remsi %0, %3 : vector<16x1xi32>
    %c0_i32_0 = arith.constant 0 : i32
    %5 = vector.broadcast %c0_i32_0 : i32 to vector<16x1xi32>
    %6 = arith.cmpi ne, %4, %5 : vector<16x1xi32>
    %c0_i32_1 = arith.constant 0 : i32
    %7 = vector.broadcast %c0_i32_1 : i32 to vector<16x1xi32>
    %8 = arith.cmpi slt, %4, %7 : vector<16x1xi32>
    %c0_i32_2 = arith.constant 0 : i32
    %9 = arith.cmpi slt, %2, %c0_i32_2 : i32
    %10 = vector.broadcast %9 : i1 to vector<16x1xi1>
    %11 = vector.broadcast %10 : vector<16x1xi1> to vector<16x1xi1>
    %12 = arith.xori %8, %11 : vector<16x1xi1>
    %13 = arith.andi %12, %6 : vector<16x1xi1>
    %14 = vector.broadcast %2 : i32 to vector<16x1xi32>
    %15 = arith.addi %4, %14 : vector<16x1xi32>
    %16 = arith.select %13, %15, %4 : vector<16x1xi1>, vector<16x1xi32>
    %c1_i32_3 = arith.constant 1 : i32
    %17 = vector.broadcast %c1_i32_3 : i32 to vector<16x1xi32>
    %18 = arith.cmpi sge, %16, %17 : vector<16x1xi32>
    %c15_i32 = arith.constant 15 : i32
    %19 = vector.broadcast %c15_i32 : i32 to vector<16x1xi32>
    %20 = arith.cmpi slt, %16, %19 : vector<16x1xi32>
    %cst = arith.constant 0.000000e+00 : f32
    %21 = vector.broadcast %cst : f32 to vector<16x128xf32>
    %c0 = arith.constant 0 : index
    %c0_4 = arith.constant 0 : index
    %22 = vector.load %arg9[%c0, %c0_4] : memref<16x128xf32, #tpu.memory_space<vmem>>, vector<16x128xf32>
    tpu.vector_store %arg9[%c0, %c0_4], %21 {strides = array<i32>} : memref<16x128xf32, #tpu.memory_space<vmem>>, vector<16x128xf32>,
    %c0_5 = arith.constant 0 : index
    %c0_6 = arith.constant 0 : index
    %23 = vector.load %arg1[%c0_5, %c0_6] : memref<16x12xf32, #tpu.memory_space<vmem>>, vector<16x12xf32>
    %c0_7 = arith.constant 0 : index
    %c0_8 = arith.constant 0 : index
    %24 = vector.load %arg9[%c0_7, %c0_8] : memref<16x128xf32, #tpu.memory_space<vmem>>, vector<16x12xf32>
    tpu.vector_store %arg9[%c0_7, %c0_8], %23 {strides = array<i32>} : memref<16x128xf32, #tpu.memory_space<vmem>>, vector<16x12xf32>,
    %c0_9 = arith.constant 0 : index
    %c0_10 = arith.constant 0 : index
    %25 = vector.load %arg9[%c0_9, %c0_10] : memref<16x128xf32, #tpu.memory_space<vmem>>, vector<16x128xf32>
    %c1_i32_11 = arith.constant 1 : i32
    %26 = tpu.dynamic_rotate %25 by %c1_i32_11 dim 0 : vector<16x128xf32>, i32 -> vector<16x128xf32>
    %cst_12 = arith.constant 0.000000e+00 : f32
    %27 = vector.shape_cast %18 : vector<16x1xi1> to vector<16x1xi1>
    %28 = vector.broadcast %27 : vector<16x1xi1> to vector<16x128xi1>
    %29 = vector.broadcast %cst_12 : f32 to vector<16x128xf32>
    %30 = arith.select %28, %26, %29 : vector<16x128xi1>, vector<16x128xf32>
    %c15_i32_13 = arith.constant 15 : i32
    %31 = tpu.dynamic_rotate %25 by %c15_i32_13 dim 0 : vector<16x128xf32>, i32 -> vector<16x128xf32>
    %cst_14 = arith.constant 0.000000e+00 : f32
    %32 = vector.shape_cast %20 : vector<16x1xi1> to vector<16x1xi1>
    %33 = vector.broadcast %32 : vector<16x1xi1> to vector<16x128xi1>
    %34 = vector.broadcast %cst_14 : f32 to vector<16x128xf32>
    %35 = arith.select %33, %31, %34 : vector<16x128xi1>, vector<16x128xf32>
    %36 = tpu.concatenate %30, %25, %35 in 1 : vector<16x128xf32>, vector<16x128xf32>, vector<16x128xf32> -> vector<16x384xf32>
    %37 = arith.truncf %36 : vector<16x384xf32> to vector<16x384xbf16>
    %c0_15 = arith.constant 0 : index
    %c0_16 = arith.constant 0 : index
    %38 = vector.load %arg2[%c0_15, %c0_16] : memref<384x128xbf16, #tpu.memory_space<vmem>>, vector<384x128xbf16>
    %cst_17 = arith.constant dense<0.000000e+00> : vector<16x128xf32>
    %39 = tpu.matmul %37, %38, %cst_17 {dimension_numbers = #tpu.dot_dimension_numbers<[1], [0], [0], [1], [0, 0, 1, 1], [], []>} : vector<16x384xbf16>, vector<384x128xbf16>, vector<16x128xf32> -> vector<16x128xf32>
    %c0_18 = arith.constant 0 : index
    %c0_19 = arith.constant 0 : index
    %40 = vector.load %arg3[%c0_18, %c0_19] : memref<1x128xf32, #tpu.memory_space<vmem>>, vector<1x128xf32>
    %41 = vector.broadcast %40 : vector<1x128xf32> to vector<16x128xf32>
    %42 = arith.addf %39, %41 : vector<16x128xf32>
    %43 = arith.mulf %42, %42 : vector<16x128xf32>
    %44 = arith.mulf %42, %43 : vector<16x128xf32>
    %cst_20 = arith.constant 4.471500e-02 : f32
    %45 = vector.broadcast %cst_20 : f32 to vector<16x128xf32>
    %46 = arith.mulf %45, %44 : vector<16x128xf32>
    %47 = arith.addf %42, %46 : vector<16x128xf32>
    %cst_21 = arith.constant 0.797884583 : f32
    %48 = vector.broadcast %cst_21 : f32 to vector<16x128xf32>
    %49 = arith.mulf %48, %47 : vector<16x128xf32>
    %50 = math.tanh %49 : vector<16x128xf32>
    %cst_22 = arith.constant 1.000000e+00 : f32
    %51 = vector.broadcast %cst_22 : f32 to vector<16x128xf32>
    %52 = arith.addf %51, %50 : vector<16x128xf32>
    %cst_23 = arith.constant 5.000000e-01 : f32
    %53 = vector.broadcast %cst_23 : f32 to vector<16x128xf32>
    %54 = arith.mulf %53, %52 : vector<16x128xf32>
    %55 = arith.mulf %42, %54 : vector<16x128xf32>
    %c1_i32_24 = arith.constant 1 : i32
    %56 = tpu.dynamic_rotate %55 by %c1_i32_24 dim 0 : vector<16x128xf32>, i32 -> vector<16x128xf32>
    %cst_25 = arith.constant 0.000000e+00 : f32
    %57 = vector.shape_cast %18 : vector<16x1xi1> to vector<16x1xi1>
    %58 = vector.broadcast %57 : vector<16x1xi1> to vector<16x128xi1>
    %59 = vector.broadcast %cst_25 : f32 to vector<16x128xf32>
    %60 = arith.select %58, %56, %59 : vector<16x128xi1>, vector<16x128xf32>
    %c15_i32_26 = arith.constant 15 : i32
    %61 = tpu.dynamic_rotate %55 by %c15_i32_26 dim 0 : vector<16x128xf32>, i32 -> vector<16x128xf32>
    %cst_27 = arith.constant 0.000000e+00 : f32
    %62 = vector.shape_cast %20 : vector<16x1xi1> to vector<16x1xi1>
    %63 = vector.broadcast %62 : vector<16x1xi1> to vector<16x128xi1>
    %64 = vector.broadcast %cst_27 : f32 to vector<16x128xf32>
    %65 = arith.select %63, %61, %64 : vector<16x128xi1>, vector<16x128xf32>
    %66 = tpu.concatenate %60, %55, %65 in 1 : vector<16x128xf32>, vector<16x128xf32>, vector<16x128xf32> -> vector<16x384xf32>
    %67 = arith.truncf %66 : vector<16x384xf32> to vector<16x384xbf16>
    %c0_28 = arith.constant 0 : index
    %c0_29 = arith.constant 0 : index
    %68 = vector.load %arg4[%c0_28, %c0_29] : memref<384x128xbf16, #tpu.memory_space<vmem>>, vector<384x128xbf16>
    %cst_30 = arith.constant dense<0.000000e+00> : vector<16x128xf32>
    %69 = tpu.matmul %67, %68, %cst_30 {dimension_numbers = #tpu.dot_dimension_numbers<[1], [0], [0], [1], [0, 0, 1, 1], [], []>} : vector<16x384xbf16>, vector<384x128xbf16>, vector<16x128xf32> -> vector<16x128xf32>
    %c0_31 = arith.constant 0 : index
    %c0_32 = arith.constant 0 : index
    %70 = vector.load %arg5[%c0_31, %c0_32] : memref<1x128xf32, #tpu.memory_space<vmem>>, vector<1x128xf32>
    %71 = vector.broadcast %70 : vector<1x128xf32> to vector<16x128xf32>
    %72 = arith.addf %69, %71 : vector<16x128xf32>
    %73 = arith.mulf %72, %72 : vector<16x128xf32>
    %74 = arith.mulf %72, %73 : vector<16x128xf32>
    %cst_33 = arith.constant 4.471500e-02 : f32
    %75 = vector.broadcast %cst_33 : f32 to vector<16x128xf32>
    %76 = arith.mulf %75, %74 : vector<16x128xf32>
    %77 = arith.addf %72, %76 : vector<16x128xf32>
    %cst_34 = arith.constant 0.797884583 : f32
    %78 = vector.broadcast %cst_34 : f32 to vector<16x128xf32>
    %79 = arith.mulf %78, %77 : vector<16x128xf32>
    %80 = math.tanh %79 : vector<16x128xf32>
    %cst_35 = arith.constant 1.000000e+00 : f32
    %81 = vector.broadcast %cst_35 : f32 to vector<16x128xf32>
    %82 = arith.addf %81, %80 : vector<16x128xf32>
    %cst_36 = arith.constant 5.000000e-01 : f32
    %83 = vector.broadcast %cst_36 : f32 to vector<16x128xf32>
    %84 = arith.mulf %83, %82 : vector<16x128xf32>
    %85 = arith.mulf %72, %84 : vector<16x128xf32>
    %c1_i32_37 = arith.constant 1 : i32
    %86 = tpu.dynamic_rotate %85 by %c1_i32_37 dim 0 : vector<16x128xf32>, i32 -> vector<16x128xf32>
    %cst_38 = arith.constant 0.000000e+00 : f32
    %87 = vector.shape_cast %18 : vector<16x1xi1> to vector<16x1xi1>
    %88 = vector.broadcast %87 : vector<16x1xi1> to vector<16x128xi1>
    %89 = vector.broadcast %cst_38 : f32 to vector<16x128xf32>
    %90 = arith.select %88, %86, %89 : vector<16x128xi1>, vector<16x128xf32>
    %c15_i32_39 = arith.constant 15 : i32
    %91 = tpu.dynamic_rotate %85 by %c15_i32_39 dim 0 : vector<16x128xf32>, i32 -> vector<16x128xf32>
    %cst_40 = arith.constant 0.000000e+00 : f32
    %92 = vector.shape_cast %20 : vector<16x1xi1> to vector<16x1xi1>
    %93 = vector.broadcast %92 : vector<16x1xi1> to vector<16x128xi1>
    %94 = vector.broadcast %cst_40 : f32 to vector<16x128xf32>
    %95 = arith.select %93, %91, %94 : vector<16x128xi1>, vector<16x128xf32>
    %96 = tpu.concatenate %90, %85, %95 in 1 : vector<16x128xf32>, vector<16x128xf32>, vector<16x128xf32> -> vector<16x384xf32>
    %97 = arith.truncf %96 : vector<16x384xf32> to vector<16x384xbf16>
    %c0_41 = arith.constant 0 : index
    %c0_42 = arith.constant 0 : index
    %98 = vector.load %arg6[%c0_41, %c0_42] : memref<384x128xbf16, #tpu.memory_space<vmem>>, vector<384x128xbf16>
    %cst_43 = arith.constant dense<0.000000e+00> : vector<16x128xf32>
    %99 = tpu.matmul %97, %98, %cst_43 {dimension_numbers = #tpu.dot_dimension_numbers<[1], [0], [0], [1], [0, 0, 1, 1], [], []>} : vector<16x384xbf16>, vector<384x128xbf16>, vector<16x128xf32> -> vector<16x128xf32>
    %c0_44 = arith.constant 0 : index
    %c0_45 = arith.constant 0 : index
    %100 = vector.load %arg7[%c0_44, %c0_45] : memref<1x128xf32, #tpu.memory_space<vmem>>, vector<1x128xf32>
    %101 = vector.broadcast %100 : vector<1x128xf32> to vector<16x128xf32>
    %102 = arith.addf %99, %101 : vector<16x128xf32>
    %103 = vector.extract_strided_slice %102 {offsets = [0, 0], sizes = [16, 12], strides = [1, 1]} : vector<16x128xf32> to vector<16x12xf32>
    %c0_46 = arith.constant 0 : index
    %c0_47 = arith.constant 0 : index
    %104 = vector.load %arg8[%c0_46, %c0_47] : memref<16x12xf32, #tpu.memory_space<vmem>>, vector<16x12xf32>
    tpu.vector_store %arg8[%c0_46, %c0_47], %103 {strides = array<i32>} : memref<16x12xf32, #tpu.memory_space<vmem>>, vector<16x12xf32>,
    return
  }
  func.func @transform_0(%arg0: i32) -> (i32, i32) {
    %c0_i32 = arith.constant 0 : i32
    %c0_i32_0 = arith.constant 0 : i32
    return %arg0, %c0_i32 : i32, i32
  }
  func.func @transform_1(%arg0: i32) -> (i32, i32) {
    %c0_i32 = arith.constant 0 : i32
    %c0_i32_0 = arith.constant 0 : i32
    %c0_i32_1 = arith.constant 0 : i32
    return %c0_i32, %c0_i32_0 : i32, i32
  }
  func.func @transform_2(%arg0: i32) -> (i32, i32) {
    %c0_i32 = arith.constant 0 : i32
    %c0_i32_0 = arith.constant 0 : i32
    %c0_i32_1 = arith.constant 0 : i32
    return %c0_i32, %c0_i32_0 : i32, i32
  }
  func.func @transform_3(%arg0: i32) -> (i32, i32) {
    %c0_i32 = arith.constant 0 : i32
    %c0_i32_0 = arith.constant 0 : i32
    %c0_i32_1 = arith.constant 0 : i32
    return %c0_i32, %c0_i32_0 : i32, i32
  }
  func.func @transform_4(%arg0: i32) -> (i32, i32) {
    %c0_i32 = arith.constant 0 : i32
    %c0_i32_0 = arith.constant 0 : i32
    %c0_i32_1 = arith.constant 0 : i32
    return %c0_i32, %c0_i32_0 : i32, i32
  }
  func.func @transform_5(%arg0: i32) -> (i32, i32) {
    %c0_i32 = arith.constant 0 : i32
    %c0_i32_0 = arith.constant 0 : i32
    %c0_i32_1 = arith.constant 0 : i32
    return %c0_i32, %c0_i32_0 : i32, i32
  }
  func.func @transform_6(%arg0: i32) -> (i32, i32) {
    %c0_i32 = arith.constant 0 : i32
    %c0_i32_0 = arith.constant 0 : i32
    %c0_i32_1 = arith.constant 0 : i32
    return %c0_i32, %c0_i32_0 : i32, i32
  }
  func.func @transform_7(%arg0: i32) -> (i32, i32) {
    %c0_i32 = arith.constant 0 : i32
    %c0_i32_0 = arith.constant 0 : i32
    return %arg0, %c0_i32 : i32, i32
  }
}

</mosaic_0001>

<llo_original>
// kernel: tpu_custom_call.1
$region0: #{tpu_custom_call.1}
  #allocation0 [shape = 'u32[]', space=smem, size = 0x4, offset = 0x4, fixed_abs, tag = 'smem constant byte address 0x4 - core index']
  #allocation1 [shape = 'u32[144,128]{1,0:T(1,128)}', space=vmem, size = 0x12000, scoped, tag = 'internal scratch']
  #allocation2 [shape = 'f32[16,128]{1,0:T(8,128)}', space=vmem, size = 0x2000, scoped, tag = 'scratch operand']
  %s0 = inlined_call_operand.vmem [shape: f32[32,12], index: 0, kind: input, shape index: {}]
  %s1 = inlined_call_operand.hbm [shape: bf16[384,128], index: 1, kind: input, shape index: {}]
  %s2 = inlined_call_operand.vmem [shape: f32[1,128], index: 2, kind: input, shape index: {}]
  %s3 = inlined_call_operand.hbm [shape: bf16[384,128], index: 3, kind: input, shape index: {}]
  %s4 = inlined_call_operand.vmem [shape: f32[1,128], index: 4, kind: input, shape index: {}]
  %s5 = inlined_call_operand.hbm [shape: bf16[384,128], index: 5, kind: input, shape index: {}]
  %s6 = inlined_call_operand.vmem [shape: f32[1,128], index: 6, kind: input, shape index: {}]
  %s7 = inlined_call_operand.vmem [shape: f32[32,12], index: 7, kind: output, shape index: {}]
  %s8 = sld [smem:[#allocation0]]
  $region73: #{tpu_custom_call.1} parent=0
    _
  %s10 = ssub.s32 1, %s8
  %s11 = scalar_select 0, %s10, %s8
  $region1: #{tpu_custom_call.1} parent=0
    #allocation3 [shape = 'u8[98304]{0}', space=vmem, size = 0x18000, scoped, tag = 'input window, operand 1, single buffered']
    #allocation4 [shape = 's32[2]{0}', space=sflag, size = 0x8, scoped, tag = 'scoped memory for tpu_custom_call.1']
    #allocation5 [shape = 'u8[98304]{0}', space=vmem, size = 0x18000, scoped, tag = 'input window, operand 3, single buffered']
    #allocation6 [shape = 's32[1]{0}', space=sflag, size = 0x4, scoped, tag = 'scoped memory for tpu_custom_call.1']
    #allocation7 [shape = 'u8[98304]{0}', space=vmem, size = 0x18000, scoped, tag = 'input window, operand 5, single buffered']
    %12 = vsyncpa [#allocation4], 0
    %13 = vsyncpa [#allocation6], 0
    loop: start=0, step=1, limit=4
    $region2: #{tpu_custom_call.1} parent=1 // loop_pre_header
      _
    $region3: #{tpu_custom_call.1} parent=1 // loop_header
      %s15 = sphi 0, %s19
      %p16 = scmp.ge.s32.totalorder %s15, 4
      %s25 = sphi 0, %s27
      %s28 = sphi 0, %s25
      %s29 = sphi 0, %s28
      %s45 = sphi 0, %s29
      %s49 = sphi 0, %s49
      %s51 = sphi 0, %s49
      %s52 = sphi 0, %s51
      %s66 = sphi 0, %s52
      %s70 = sphi 0, %s70
      %s72 = sphi 0, %s70
      %s73 = sphi 0, %s72
      %s87 = sphi 0, %s73
      %s91 = sphi 0, %s91
      %s93 = sphi 0, %s91
      %s94 = sphi 0, %s93
      %s108 = sphi 0, %s94
      %s112 = sphi 0, %s112
      %s114 = sphi 0, %s112
      %s115 = sphi 0, %s114
      %s129 = sphi 0, %s115
      %s133 = sphi 0, %s133
      %s135 = sphi 0, %s133
      %s136 = sphi 0, %s135
      %s150 = sphi 0, %s136
      %s154 = sphi 0, %s154
      %s156 = sphi 0, %s154
      %s157 = sphi 0, %s156
      %s171 = sphi 0, %s157
      %s177 = sphi 0, %s179
      %s180 = sphi 0, %s177
      %s181 = sphi 0, %s180
      %s197 = sphi 0, %s181
    $region4: #{tpu_custom_call.1} parent=1 // loop_header_branch
      %18 = sbr.rel (%p16) target = $region8
    $region5: #{tpu_custom_call.1} parent=1 // loop_body
      %s20 = ssub.s32 %s15, 1
      %s21 = ssub.s32 %s15, 2
      %s22 = sadd.s32 %s15, 1
      %s23 = ssub.s32 %s15, %s22
      %p24 = scmp.eq.s32.totalorder %s23, 0
      %s26 = sadd.s32 %s25, 1
      %s27 = scalar_select %p24, %s25, %s26
      %p30 = pneg %p24
      %p31 = scmp.eq.s32.totalorder %s15, 1
      %p32 = por %p30, %p31
      %p33 = scmp.ne.s32.totalorder %s25, %s28
      %p34 = scmp.eq.s32.totalorder %s15, 0
      %p35 = por %p33, %p34
      %p36 = scmp.ne.s32.totalorder %s25, %s28
      %p37 = scmp.eq.s32.totalorder %s20, 1
      %p38 = por %p36, %p37
      %p39 = scmp.ne.s32.totalorder %s28, %s29
      %p40 = scmp.eq.s32.totalorder %s20, 0
      %p41 = por %p39, %p40
      %p42 = scmp.ne.s32.totalorder %s28, %s29
      %p43 = scmp.eq.s32.totalorder %s21, 1
      %p44 = por %p42, %p43
      %p46 = scmp.ne.s32.totalorder %s29, %s45
      %p47 = scmp.eq.s32.totalorder %s21, 0
      %p48 = por %p46, %p47
      %s50 = sadd.s32 %s49, 1
      %p53 = scmp.eq.s32.totalorder %s15, 1
      %p54 = scmp.ne.s32.totalorder %s49, %s51
      %p55 = scmp.eq.s32.totalorder %s15, 0
      %p56 = por %p54, %p55
      %p57 = scmp.ne.s32.totalorder %s49, %s51
      %p58 = scmp.eq.s32.totalorder %s20, 1
      %p59 = por %p57, %p58
      %p60 = scmp.ne.s32.totalorder %s51, %s52
      %p61 = scmp.eq.s32.totalorder %s20, 0
      %p62 = por %p60, %p61
      %p63 = scmp.ne.s32.totalorder %s51, %s52
      %p64 = scmp.eq.s32.totalorder %s21, 1
      %p65 = por %p63, %p64
      %p67 = scmp.ne.s32.totalorder %s52, %s66
      %p68 = scmp.eq.s32.totalorder %s21, 0
      %p69 = por %p67, %p68
      %s71 = sadd.s32 %s70, 1
      %p74 = scmp.eq.s32.totalorder %s15, 1
      %p75 = scmp.ne.s32.totalorder %s70, %s72
      %p76 = scmp.eq.s32.totalorder %s15, 0
      %p77 = por %p75, %p76
      %p78 = scmp.ne.s32.totalorder %s70, %s72
      %p79 = scmp.eq.s32.totalorder %s20, 1
      %p80 = por %p78, %p79
      %p81 = scmp.ne.s32.totalorder %s72, %s73
      %p82 = scmp.eq.s32.totalorder %s20, 0
      %p83 = por %p81, %p82
      %p84 = scmp.ne.s32.totalorder %s72, %s73
      %p85 = scmp.eq.s32.totalorder %s21, 1
      %p86 = por %p84, %p85
      %p88 = scmp.ne.s32.totalorder %s73, %s87
      %p89 = scmp.eq.s32.totalorder %s21, 0
      %p90 = por %p88, %p89
      %s92 = sadd.s32 %s91, 1
      %p95 = scmp.eq.s32.totalorder %s15, 1
      %p96 = scmp.ne.s32.totalorder %s91, %s93
      %p97 = scmp.eq.s32.totalorder %s15, 0
      %p98 = por %p96, %p97
      %p99 = scmp.ne.s32.totalorder %s91, %s93
      %p100 = scmp.eq.s32.totalorder %s20, 1
      %p101 = por %p99, %p100
      %p102 = scmp.ne.s32.totalorder %s93, %s94
      %p103 = scmp.eq.s32.totalorder %s20, 0
      %p104 = por %p102, %p103
      %p105 = scmp.ne.s32.totalorder %s93, %s94
      %p106 = scmp.eq.s32.totalorder %s21, 1
      %p107 = por %p105, %p106
      %p109 = scmp.ne.s32.totalorder %s94, %s108
      %p110 = scmp.eq.s32.totalorder %s21, 0
      %p111 = por %p109, %p110
      %s113 = sadd.s32 %s112, 1
      %p116 = scmp.eq.s32.totalorder %s15, 1
      %p117 = scmp.ne.s32.totalorder %s112, %s114
      %p118 = scmp.eq.s32.totalorder %s15, 0
      %p119 = por %p117, %p118
      %p120 = scmp.ne.s32.totalorder %s112, %s114
      %p121 = scmp.eq.s32.totalorder %s20, 1
      %p122 = por %p120, %p121
      %p123 = scmp.ne.s32.totalorder %s114, %s115
      %p124 = scmp.eq.s32.totalorder %s20, 0
      %p125 = por %p123, %p124
      %p126 = scmp.ne.s32.totalorder %s114, %s115
      %p127 = scmp.eq.s32.totalorder %s21, 1
      %p128 = por %p126, %p127
      %p130 = scmp.ne.s32.totalorder %s115, %s129
      %p131 = scmp.eq.s32.totalorder %s21, 0
      %p132 = por %p130, %p131
      %s134 = sadd.s32 %s133, 1
      %p137 = scmp.eq.s32.totalorder %s15, 1
      %p138 = scmp.ne.s32.totalorder %s133, %s135
      %p139 = scmp.eq.s32.totalorder %s15, 0
      %p140 = por %p138, %p139
      %p141 = scmp.ne.s32.totalorder %s133, %s135
      %p142 = scmp.eq.s32.totalorder %s20, 1
      %p143 = por %p141, %p142
      %p144 = scmp.ne.s32.totalorder %s135, %s136
      %p145 = scmp.eq.s32.totalorder %s20, 0
      %p146 = por %p144, %p145
      %p147 = scmp.ne.s32.totalorder %s135, %s136
      %p148 = scmp.eq.s32.totalorder %s21, 1
      %p149 = por %p147, %p148
      %p151 = scmp.ne.s32.totalorder %s136, %s150
      %p152 = scmp.eq.s32.totalorder %s21, 0
      %p153 = por %p151, %p152
      %s155 = sadd.s32 %s154, 1
      %p158 = scmp.eq.s32.totalorder %s15, 1
      %p159 = scmp.ne.s32.totalorder %s154, %s156
      %p160 = scmp.eq.s32.totalorder %s15, 0
      %p161 = por %p159, %p160
      %p162 = scmp.ne.s32.totalorder %s154, %s156
      %p163 = scmp.eq.s32.totalorder %s20, 1
      %p164 = por %p162, %p163
      %p165 = scmp.ne.s32.totalorder %s156, %s157
      %p166 = scmp.eq.s32.totalorder %s20, 0
      %p167 = por %p165, %p166
      %p168 = scmp.ne.s32.totalorder %s156, %s157
      %p169 = scmp.eq.s32.totalorder %s21, 1
      %p170 = por %p168, %p169
      %p172 = scmp.ne.s32.totalorder %s157, %s171
      %p173 = scmp.eq.s32.totalorder %s21, 0
      %p174 = por %p172, %p173
      %s175 = ssub.s32 %s15, %s22
      %p176 = scmp.eq.s32.totalorder %s175, 0
      %s178 = sadd.s32 %s177, 1
      %s179 = scalar_select %p176, %s177, %s178
      %p182 = pneg %p176
      %p183 = scmp.eq.s32.totalorder %s15, 1
      %p184 = por %p182, %p183
      %p185 = scmp.ne.s32.totalorder %s177, %s180
      %p186 = scmp.eq.s32.totalorder %s15, 0
      %p187 = por %p185, %p186
      %p188 = scmp.ne.s32.totalorder %s177, %s180
      %p189 = scmp.eq.s32.totalorder %s20, 1
      %p190 = por %p188, %p189
      %p191 = scmp.ne.s32.totalorder %s180, %s181
      %p192 = scmp.eq.s32.totalorder %s20, 0
      %p193 = por %p191, %p192
      %p194 = scmp.ne.s32.totalorder %s180, %s181
      %p195 = scmp.eq.s32.totalorder %s21, 1
      %p196 = por %p194, %p195
      %p198 = scmp.ne.s32.totalorder %s181, %s197
      %p199 = scmp.eq.s32.totalorder %s21, 0
      %p200 = por %p198, %p199
      %p201 = scmp.le.s32.totalorder 1, %s15
      %p202 = scmp.lt.s32.totalorder %s15, 3
      %p203 = pnand %p201, %p202
      %p204 = pneg %p203
      // Predicated region
      $region9: #{tpu_custom_call.1} parent=5 // pred_check
        _
      $region10: #{tpu_custom_call.1} parent=5 // pred_check_branch
        %206 = sbr.rel (%p203) target = $region12
      $region11: #{tpu_custom_call.1} parent=5 // pred_region
        %s207 = ssub.s32 %s15, 1
        // Predicated region
        $region13: #{tpu_custom_call.1} parent=11 // pred_check
          %p208 = pneg %p62
        $region14: #{tpu_custom_call.1} parent=11 // pred_check_branch
          %210 = sbr.rel (%p208) target = $region16
        $region15: #{tpu_custom_call.1} parent=11 // pred_region
          %s212 = ssub.s32 3072, 3072
          %213 = vsyncadd [#allocation4], %s212
          %s214 = sshll.u32 [#allocation3], 4
          %s215 = int_to_ptr.vmem [resolvable:$true] %s214
          %220 = dma.hbm_to_vmem [thread:$0]  %s1, 3072, %s215, [#allocation4], 64, 64, 4
        $region16: #{tpu_custom_call.1} parent=11 // pred_fallthru
          _
        // Predicated region
        $region17: #{tpu_custom_call.1} parent=11 // pred_check
          %p221 = pneg %p83
        $region18: #{tpu_custom_call.1} parent=11 // pred_check_branch
          %223 = sbr.rel (%p221) target = $region20
        $region19: #{tpu_custom_call.1} parent=11 // pred_region
          _
        $region20: #{tpu_custom_call.1} parent=11 // pred_fallthru
          _
        // Predicated region
        $region21: #{tpu_custom_call.1} parent=11 // pred_check
          %p224 = pneg %p104
        $region22: #{tpu_custom_call.1} parent=11 // pred_check_branch
          %226 = sbr.rel (%p224) target = $region24
        $region23: #{tpu_custom_call.1} parent=11 // pred_region
          %s228 = ssub.s32 3072, 3072
          %229 = vsyncadd [#allocation6], %s228
          %s230 = sshll.u32 [#allocation5], 4
          %s231 = int_to_ptr.vmem [resolvable:$true] %s230
          %236 = dma.hbm_to_vmem [thread:$0]  %s3, 3072, %s231, [#allocation6], 64, 64, 4
        $region24: #{tpu_custom_call.1} parent=11 // pred_fallthru
          _
        // Predicated region
        $region25: #{tpu_custom_call.1} parent=11 // pred_check
          %p237 = pneg %p125
        $region26: #{tpu_custom_call.1} parent=11 // pred_check_branch
          %239 = sbr.rel (%p237) target = $region28
        $region27: #{tpu_custom_call.1} parent=11 // pred_region
          _
        $region28: #{tpu_custom_call.1} parent=11 // pred_fallthru
          _
        // Predicated region
        $region29: #{tpu_custom_call.1} parent=11 // pred_check
          %p240 = pneg %p146
        $region30: #{tpu_custom_call.1} parent=11 // pred_check_branch
          %242 = sbr.rel (%p240) target = $region32
        $region31: #{tpu_custom_call.1} parent=11 // pred_region
          %s244 = ssub.s32 3072, 3072
          %245 = vsyncadd [#allocation6], %s244
          %s246 = sshll.u32 [#allocation7], 4
          %s247 = int_to_ptr.vmem [resolvable:$true] %s246
          %252 = dma.hbm_to_vmem [thread:$0]  %s5, 3072, %s247, [#allocation6], 64, 64, 4
        $region32: #{tpu_custom_call.1} parent=11 // pred_fallthru
          _
        // Predicated region
        $region33: #{tpu_custom_call.1} parent=11 // pred_check
          %p253 = pneg %p167
        $region34: #{tpu_custom_call.1} parent=11 // pred_check_branch
          %255 = sbr.rel (%p253) target = $region36
        $region35: #{tpu_custom_call.1} parent=11 // pred_region
          _
        $region36: #{tpu_custom_call.1} parent=11 // pred_fallthru
          _
      $region12: #{tpu_custom_call.1} parent=5 // pred_fallthru
        _
      %p256 = scmp.lt.s32.totalorder %s15, 2
      // Predicated region
      $region37: #{tpu_custom_call.1} parent=5 // pred_check
        %p257 = pneg %p256
      $region38: #{tpu_custom_call.1} parent=5 // pred_check_branch
        %259 = sbr.rel (%p257) target = $region40
      $region39: #{tpu_custom_call.1} parent=5 // pred_region
        // Predicated region
        $region41: #{tpu_custom_call.1} parent=39 // pred_check
          %p260 = pneg %p35
        $region42: #{tpu_custom_call.1} parent=39 // pred_check_branch
          %262 = sbr.rel (%p260) target = $region44
        $region43: #{tpu_custom_call.1} parent=39 // pred_region
          %s263 = smul.u32 2, %s15
          %p264 = scmp.lt.s32.totalorder %s263, 3
          %s265 = scalar_select %p264, %s263, 3
          %s266 = smul.addr %s265, 8
          %s267 = scalar_lea.vmem %s0, %s266
          %s268 = smul.u32 2, %s15
        $region44: #{tpu_custom_call.1} parent=39 // pred_fallthru
          _
      $region40: #{tpu_custom_call.1} parent=5 // pred_fallthru
        _
      %p269 = scmp.le.s32.totalorder 1, %s15
      %p270 = scmp.lt.s32.totalorder %s15, 3
      %p271 = pnand %p269, %p270
      %p272 = pneg %p271
      // Predicated region
      $region45: #{tpu_custom_call.1} parent=5 // pred_check
        _
      $region46: #{tpu_custom_call.1} parent=5 // pred_check_branch
        %274 = sbr.rel (%p271) target = $region48
      $region47: #{tpu_custom_call.1} parent=5 // pred_region
        %s275 = ssub.s32 %s15, 1
        // Predicated region
        $region49: #{tpu_custom_call.1} parent=47 // pred_check
          %p276 = pneg %p62
        $region50: #{tpu_custom_call.1} parent=47 // pred_check_branch
          %278 = sbr.rel (%p276) target = $region52
        $region51: #{tpu_custom_call.1} parent=47 // pred_region
          %279 = dma.done [#allocation4], 3072
        $region52: #{tpu_custom_call.1} parent=47 // pred_fallthru
          _
        // Predicated region
        $region53: #{tpu_custom_call.1} parent=47 // pred_check
          %p280 = pneg %p104
        $region54: #{tpu_custom_call.1} parent=47 // pred_check_branch
          %282 = sbr.rel (%p280) target = $region56
        $region55: #{tpu_custom_call.1} parent=47 // pred_region
          %283 = dma.done [#allocation6], 3072
        $region56: #{tpu_custom_call.1} parent=47 // pred_fallthru
          _
        // Predicated region
        $region57: #{tpu_custom_call.1} parent=47 // pred_check
          %p284 = pneg %p146
        $region58: #{tpu_custom_call.1} parent=47 // pred_check_branch
          %286 = sbr.rel (%p284) target = $region60
        $region59: #{tpu_custom_call.1} parent=47 // pred_region
          %287 = dma.done [#allocation6], 3072
        $region60: #{tpu_custom_call.1} parent=47 // pred_fallthru
          _
        %s288 = smul.u32 2, %s20
        %p289 = scmp.lt.s32.totalorder %s288, 3
        %s290 = scalar_select %p289, %s288, 3
        %s291 = smul.addr %s290, 8
        %s292 = scalar_lea.vmem %s0, %s291
        %p293 = pneg %p41
        %p294 = pneg %p38
        %p295 = pneg %p62
        %p296 = pneg %p59
        %p297 = pneg %p83
        %p298 = pneg %p80
        %p299 = pneg %p104
        %p300 = pneg %p101
        %p301 = pneg %p125
        %p302 = pneg %p122
        %p303 = pneg %p146
        %p304 = pneg %p143
        %p305 = pneg %p167
        %p306 = pneg %p164
        %p307 = pneg %p193
        %p308 = pneg %p190
        %s309 = smul.u32 2, %s20
        %p310 = scmp.lt.s32.totalorder %s309, 3
        %s311 = scalar_select %p310, %s309, 3
        %s312 = smul.addr %s311, 8
        %s313 = scalar_lea.vmem %s7, %s312
        %s314 = smul.u32 2, %s20
        %p315 = scmp.lt.s32.totalorder %s314, 3
        %s316 = scalar_select %p315, %s314, 3
        %s317 = smul.addr %s316, 8
        %s318 = scalar_lea.vmem %s0, %s317
        %s319 = smul.u32 2, %s20
        %s320 = smul.u32 2, %s20
        %p321 = scmp.lt.s32.totalorder %s320, 3
        %s322 = scalar_select %p321, %s320, 3
        %s323 = smul.addr %s322, 8
        %s324 = scalar_lea.vmem %s7, %s323
        %s325 = smul.u32 2, %s20
        %v327 = vlaneseq
        %v328 = vshrl.u32 %v327, 7
        %v329 = vadd.s32 %v328, 8
        %vm330 = vcmp.lt.s32.totalorder %v328, 0
        %v331 = vsub.s32 0, %v328
        %v332 = vsel %vm330, %v331, %v328
        %v333 = vshrl.u32 %v332, 4
        %v334 = vand.u32 %v332, 15
        %v335 = vsub.s32 0, %v334
        %v336 = vsel %vm330, %v335, %v334
        %vm337 = vcmp.lt.s32.totalorder %v329, 0
        %v338 = vsub.s32 0, %v329
        %v339 = vsel %vm337, %v338, %v329
        %v340 = vshrl.u32 %v339, 4
        %v341 = vand.u32 %v339, 15
        %v342 = vsub.s32 0, %v341
        %v343 = vsel %vm337, %v342, %v341
        %vm344 = vcmp.ne.s32.totalorder %v336, 0
        %vm345 = vcmp.ne.s32.totalorder %v343, 0
        %vm346 = vcmp.lt.s32.totalorder %v336, 0
        %vm347 = vcmp.lt.s32.totalorder %v343, 0
        %vm348 = vmand %vm346, %vm344
        %vm349 = vmand %vm347, %vm345
        %v350 = vadd.s32 %v336, 16
        %v351 = vadd.s32 %v343, 16
        %v352 = vsel %vm348, %v350, %v336
        %v353 = vsel %vm349, %v351, %v343
        %vm354 = vcmp.ge.s32.totalorder %v352, 1
        %vm355 = vcmp.ge.s32.totalorder %v353, 1
        %vm356 = vcmp.lt.s32.totalorder %v352, 15
        %vm357 = vcmp.lt.s32.totalorder %v353, 15
        %358 = vst [vmem:[#allocation2] sm:$0xff] 0.0
        %359 = vst [vmem:[#allocation2 + $0x8] sm:$0xff] 0.0
        %v360 = vld [vmem:[%s318] sm:$0xff]
        %v361 = vld [vmem:[%s318 + $0x8] sm:$0xff]
        %vm362 = vcmask 97280
        %363 = vst.msk [vmem:[#allocation2] sm:$0xff] %vm362, %v360
        %364 = vst.msk [vmem:[#allocation2 + $0x8] sm:$0xff] %vm362, %v361
        %v365 = vld [vmem:[#allocation2] sm:$0xff]
        %v366 = vld [vmem:[#allocation2 + $0x8] sm:$0xff]
        %v367 = vrot.slane %v365, 7
        %v368 = vrot.slane %v366, 7
        %vm369 = vcmp.lt.s32.totalorder %v328, 1
        %v370 = vsel %vm369, %v367, %v368
        %v371 = vsel %vm369, %v368, %v367
        %v372 = vsel %vm354, 1, 0
        %v373 = vsel %vm355, 1, 0
        %vm374 = vcmp.eq.s32.totalorder %v372, 1
        %vm375 = vcmp.eq.s32.totalorder %v373, 1
        %v376 = vsel %vm374, %v371, 0.0
        %v377 = vsel %vm375, %v370, 0.0
        %v378 = vrot.slane %v365, 1
        %v379 = vrot.slane %v366, 1
        %vm380 = vcmp.lt.s32.totalorder %v328, 7
        %v381 = vsel %vm380, %v378, %v379
        %v382 = vsel %vm380, %v379, %v378
        %v383 = vsel %vm356, 1, 0
        %v384 = vsel %vm357, 1, 0
        %vm385 = vcmp.eq.s32.totalorder %v383, 1
        %vm386 = vcmp.eq.s32.totalorder %v384, 1
        %v387 = vsel %vm385, %v381, 0.0
        %v388 = vsel %vm386, %v382, 0.0
        %v389 = vpack.c.bf16 %v377, %v376
        %v390 = vpack.c.bf16 %v366, %v365
        %v391 = vpack.c.bf16 %v388, %v387
        %v392 = vld [vmem:[#allocation3] sm:$0xf]
        %v393 = vld [vmem:[#allocation3 + $0x4] sm:$0xf]
        %v394 = vld [vmem:[#allocation3 + $0x8] sm:$0xf]
        %v395 = vld [vmem:[#allocation3 + $0xc] sm:$0xf]
        %v396 = vld [vmem:[#allocation3 + $0x10] sm:$0xf]
        %v397 = vld [vmem:[#allocation3 + $0x14] sm:$0xf]
        %v398 = vld [vmem:[#allocation3 + $0x18] sm:$0xf]
        %v399 = vld [vmem:[#allocation3 + $0x1c] sm:$0xf]
        %v400 = vld [vmem:[#allocation3 + $0x20] sm:$0xf]
        %v401 = vld [vmem:[#allocation3 + $0x24] sm:$0xf]
        %v402 = vld [vmem:[#allocation3 + $0x28] sm:$0xf]
        %v403 = vld [vmem:[#allocation3 + $0x2c] sm:$0xf]
        %v404 = vld [vmem:[#allocation3 + $0x30] sm:$0xf]
        %v405 = vld [vmem:[#allocation3 + $0x34] sm:$0xf]
        %v406 = vld [vmem:[#allocation3 + $0x38] sm:$0xf]
        %v407 = vld [vmem:[#allocation3 + $0x3c] sm:$0xf]
        %v408 = vld [vmem:[#allocation3 + $0x40] sm:$0xf]
        %v409 = vld [vmem:[#allocation3 + $0x44] sm:$0xf]
        %v410 = vld [vmem:[#allocation3 + $0x48] sm:$0xf]
        %v411 = vld [vmem:[#allocation3 + $0x4c] sm:$0xf]
        %v412 = vld [vmem:[#allocation3 + $0x50] sm:$0xf]
        %v413 = vld [vmem:[#allocation3 + $0x54] sm:$0xf]
        %v414 = vld [vmem:[#allocation3 + $0x58] sm:$0xf]
        %v415 = vld [vmem:[#allocation3 + $0x5c] sm:$0xf]
        %v416 = vld [vmem:[#allocation3 + $0x60] sm:$0xf]
        %v417 = vld [vmem:[#allocation3 + $0x64] sm:$0xf]
        %v418 = vld [vmem:[#allocation3 + $0x68] sm:$0xf]
        %v419 = vld [vmem:[#allocation3 + $0x6c] sm:$0xf]
        %v420 = vld [vmem:[#allocation3 + $0x70] sm:$0xf]
        %v421 = vld [vmem:[#allocation3 + $0x74] sm:$0xf]
        %v422 = vld [vmem:[#allocation3 + $0x78] sm:$0xf]
        %v423 = vld [vmem:[#allocation3 + $0x7c] sm:$0xf]
        %v424 = vld [vmem:[#allocation3 + $0x80] sm:$0xf]
        %v425 = vld [vmem:[#allocation3 + $0x84] sm:$0xf]
        %v426 = vld [vmem:[#allocation3 + $0x88] sm:$0xf]
        %v427 = vld [vmem:[#allocation3 + $0x8c] sm:$0xf]
        %v428 = vld [vmem:[#allocation3 + $0x90] sm:$0xf]
        %v429 = vld [vmem:[#allocation3 + $0x94] sm:$0xf]
        %v430 = vld [vmem:[#allocation3 + $0x98] sm:$0xf]
        %v431 = vld [vmem:[#allocation3 + $0x9c] sm:$0xf]
        %v432 = vld [vmem:[#allocation3 + $0xa0] sm:$0xf]
        %v433 = vld [vmem:[#allocation3 + $0xa4] sm:$0xf]
        %v434 = vld [vmem:[#allocation3 + $0xa8] sm:$0xf]
        %v435 = vld [vmem:[#allocation3 + $0xac] sm:$0xf]
        %v436 = vld [vmem:[#allocation3 + $0xb0] sm:$0xf]
        %v437 = vld [vmem:[#allocation3 + $0xb4] sm:$0xf]
        %v438 = vld [vmem:[#allocation3 + $0xb8] sm:$0xf]
        %v439 = vld [vmem:[#allocation3 + $0xbc] sm:$0xf]
        %v440 = vld [vmem:[%s2] sm:$0x1]
        %v442 = vlaneseq
        %v443 = vshrl.u32 %v442, 7
        %v444 = vsub.s32 0, %v443
        %v445 = vrot.slane %v440, %v444
        %v495 = vunpack.c.l.b16 %v392
        %v496 = vunpack.c.l.b16 %v393
        %v497 = vunpack.c.l.b16 %v394
        %v498 = vunpack.c.l.b16 %v395
        %v499 = vunpack.c.l.b16 %v396
        %v500 = vunpack.c.l.b16 %v397
        %v501 = vunpack.c.l.b16 %v398
        %v502 = vunpack.c.l.b16 %v399
        %v503 = vunpack.c.l.b16 %v400
        %v504 = vunpack.c.l.b16 %v401
        %v505 = vunpack.c.l.b16 %v402
        %v506 = vunpack.c.l.b16 %v403
        %v507 = vunpack.c.l.b16 %v404
        %v508 = vunpack.c.l.b16 %v405
        %v509 = vunpack.c.l.b16 %v406
        %v510 = vunpack.c.l.b16 %v407
        %v511 = vunpack.c.l.b16 %v408
        %v512 = vunpack.c.l.b16 %v409
        %v513 = vunpack.c.l.b16 %v410
        %v514 = vunpack.c.l.b16 %v411
        %v515 = vunpack.c.l.b16 %v412
        %v516 = vunpack.c.l.b16 %v413
        %v517 = vunpack.c.l.b16 %v414
        %v518 = vunpack.c.l.b16 %v415
        %v519 = vunpack.c.l.b16 %v416
        %v520 = vunpack.c.l.b16 %v417
        %v521 = vunpack.c.l.b16 %v418
        %v522 = vunpack.c.l.b16 %v419
        %v523 = vunpack.c.l.b16 %v420
        %v524 = vunpack.c.l.b16 %v421
        %v525 = vunpack.c.l.b16 %v422
        %v526 = vunpack.c.l.b16 %v423
        %v527 = vunpack.c.l.b16 %v424
        %v528 = vunpack.c.l.b16 %v425
        %v529 = vunpack.c.l.b16 %v426
        %v530 = vunpack.c.l.b16 %v427
        %v531 = vunpack.c.l.b16 %v428
        %v532 = vunpack.c.l.b16 %v429
        %v533 = vunpack.c.l.b16 %v430
        %v534 = vunpack.c.l.b16 %v431
        %v535 = vunpack.c.l.b16 %v432
        %v536 = vunpack.c.l.b16 %v433
        %v537 = vunpack.c.l.b16 %v434
        %v538 = vunpack.c.l.b16 %v435
        %v539 = vunpack.c.l.b16 %v436
        %v540 = vunpack.c.l.b16 %v437
        %v541 = vunpack.c.l.b16 %v438
        %v542 = vunpack.c.l.b16 %v439
        %v543 = vpack.c.b16 %v496, %v495
        %v544 = vpack.c.b16 %v498, %v497
        %v545 = vpack.c.b16 %v500, %v499
        %v546 = vpack.c.b16 %v502, %v501
        %v547 = vpack.c.b16 %v504, %v503
        %v548 = vpack.c.b16 %v506, %v505
        %v549 = vpack.c.b16 %v508, %v507
        %v550 = vpack.c.b16 %v510, %v509
        %v551 = vpack.c.b16 %v512, %v511
        %v552 = vpack.c.b16 %v514, %v513
        %v553 = vpack.c.b16 %v516, %v515
        %v554 = vpack.c.b16 %v518, %v517
        %v555 = vpack.c.b16 %v520, %v519
        %v556 = vpack.c.b16 %v522, %v521
        %v557 = vpack.c.b16 %v524, %v523
        %v558 = vpack.c.b16 %v526, %v525
        %v559 = vpack.c.b16 %v528, %v527
        %v560 = vpack.c.b16 %v530, %v529
        %v561 = vpack.c.b16 %v532, %v531
        %v562 = vpack.c.b16 %v534, %v533
        %v563 = vpack.c.b16 %v536, %v535
        %v564 = vpack.c.b16 %v538, %v537
        %v565 = vpack.c.b16 %v540, %v539
        %v566 = vpack.c.b16 %v542, %v541
        %591 = vmatprep.subr.bf16.mxu0 0
        %592 = vmatpush1.bf16.msra.mxu0 %v543
        %593 = vmatprep.subr.bf16.mxu0 0
        %594 = vmatpush1.bf16.msra.mxu0 %v544
        %595 = vmatprep.subr.bf16.mxu0 0
        %596 = vmatpush1.bf16.msra.mxu0 %v545
        %597 = vmatprep.subr.bf16.mxu0 0
        %598 = vmatpush1.bf16.msra.mxu0 %v546
        %599 = vmatprep.subr.bf16.mxu0 0
        %600 = vmatpush1.bf16.msra.mxu0 %v547
        %601 = vmatprep.subr.bf16.mxu0 0
        %602 = vmatpush1.bf16.msra.mxu0 %v548
        %603 = vmatprep.subr.bf16.mxu0 0
        %604 = vmatpush1.bf16.msra.mxu0 %v549
        %605 = vmatprep.subr.bf16.mxu0 0
        %606 = vmatpush1.bf16.msra.mxu0 %v550
        %607 = vmatprep.subr.bf16.mxu0 0
        %608 = vmatpush1.bf16.msra.mxu0 %v551
        %609 = vmatprep.subr.bf16.mxu0 0
        %610 = vmatpush1.bf16.msra.mxu0 %v552
        %611 = vmatprep.subr.bf16.mxu0 0
        %612 = vmatpush1.bf16.msra.mxu0 %v553
        %613 = vmatprep.subr.bf16.mxu0 0
        %614 = vmatpush1.bf16.msra.mxu0 %v554
        %615 = vmatprep.subr.bf16.mxu0 0
        %616 = vmatpush1.bf16.msra.mxu0 %v555
        %617 = vmatprep.subr.bf16.mxu0 0
        %618 = vmatpush1.bf16.msra.mxu0 %v556
        %619 = vmatprep.subr.bf16.mxu0 0
        %620 = vmatpush1.bf16.msra.mxu0 %v557
        %621 = vmatprep.subr.bf16.mxu0 0
        %622 = vmatpush1.bf16.msra.mxu0 %v558
        %623 = vmatprep.mubr.bf16.mxu0 %v390
        %624 = vmatmul.mubr.bf16.gmra.mrb[0].mxu0 %v389
        %v625 = vpop.f32.mrb[0].mxu0
        %v626 = vadd.f32 %v445, %v625
        %v627 = vpop.f32.mrb[0].mxu0
        %v628 = vpop.f32.mrb[0].mxu0
        %v629 = vadd.f32 %v445, %v628
        %v630 = vpop.f32.mrb[0].mxu0
        %631 = vdwg.mxu0
        %632 = vmatprep.subr.bf16.mxu0 0
        %633 = vmatpush1.bf16.msra.mxu0 %v559
        %634 = vmatprep.subr.bf16.mxu0 0
        %635 = vmatpush1.bf16.msra.mxu0 %v560
        %636 = vmatprep.subr.bf16.mxu0 0
        %637 = vmatpush1.bf16.msra.mxu0 %v561
        %638 = vmatprep.subr.bf16.mxu0 0
        %639 = vmatpush1.bf16.msra.mxu0 %v562
        %640 = vmatprep.subr.bf16.mxu0 0
        %641 = vmatpush1.bf16.msra.mxu0 %v563
        %642 = vmatprep.subr.bf16.mxu0 0
        %643 = vmatpush1.bf16.msra.mxu0 %v564
        %644 = vmatprep.subr.bf16.mxu0 0
        %645 = vmatpush1.bf16.msra.mxu0 %v565
        %646 = vmatprep.subr.bf16.mxu0 0
        %647 = vmatpush1.bf16.msra.mxu0 %v566
        %648 = vmatprep.subr.bf16.mxu0 0
        %649 = vmatpush1.bf16.msra.mxu0 0
        %650 = vmatprep.subr.bf16.mxu0 0
        %651 = vmatpush1.bf16.msra.mxu0 0
        %652 = vmatprep.subr.bf16.mxu0 0
        %653 = vmatpush1.bf16.msra.mxu0 0
        %654 = vmatprep.subr.bf16.mxu0 0
        %655 = vmatpush1.bf16.msra.mxu0 0
        %656 = vmatprep.subr.bf16.mxu0 0
        %657 = vmatpush1.bf16.msra.mxu0 0
        %658 = vmatprep.subr.bf16.mxu0 0
        %659 = vmatpush1.bf16.msra.mxu0 0
        %660 = vmatprep.subr.bf16.mxu0 0
        %661 = vmatpush1.bf16.msra.mxu0 0
        %662 = vmatprep.subr.bf16.mxu0 0
        %663 = vmatpush1.bf16.msra.mxu0 0
        %664 = vmatprep.mubr.bf16.mxu0 0
        %665 = vmatmul.mubr.bf16.gmra.mrb[0].mxu0 %v391
        %v666 = vpop.f32.mrb[0].mxu0
        %v667 = vadd.f32 %v626, %v666
        %v668 = vpop.f32.mrb[0].mxu0
        %v669 = vpop.f32.mrb[0].mxu0
        %v670 = vadd.f32 %v629, %v669
        %v671 = vpop.f32.mrb[0].mxu0
        %672 = vdwg.mxu0
        %v673 = vmul.f32 %v667, %v667
        %v674 = vmul.f32 %v670, %v670
        %v675 = vmul.f32 %v667, %v673
        %v676 = vmul.f32 %v670, %v674
        %v677 = vmul.f32 %v675, 0.044715
        %v678 = vmul.f32 %v676, 0.044715
        %v679 = vadd.f32 %v667, %v677
        %v680 = vadd.f32 %v670, %v678
        %v681 = vmul.f32 %v679, 0.7978846
        %v682 = vmul.f32 %v680, 0.7978846
        %v683 = vtanh.pop %v681
        %v684 = vtanh.pop %v682
        %v685 = vadd.f32 %v683, 1.0
        %v686 = vadd.f32 %v684, 1.0
        %v687 = vmul.f32 %v685, 0.5
        %v688 = vmul.f32 %v686, 0.5
        %v689 = vmul.f32 %v667, %v687
        %v690 = vmul.f32 %v670, %v688
        %v691 = vrot.slane %v689, 7
        %v692 = vrot.slane %v690, 7
        %v693 = vsel %vm369, %v691, %v692
        %v694 = vsel %vm369, %v692, %v691
        %v695 = vsel %vm374, %v694, 0.0
        %v696 = vsel %vm375, %v693, 0.0
        %v697 = vrot.slane %v689, 1
        %v698 = vrot.slane %v690, 1
        %v699 = vsel %vm380, %v697, %v698
        %v700 = vsel %vm380, %v698, %v697
        %v701 = vsel %vm385, %v699, 0.0
        %v702 = vsel %vm386, %v700, 0.0
        %v703 = vpack.c.bf16 %v696, %v695
        %v704 = vpack.c.bf16 %v690, %v689
        %v705 = vpack.c.bf16 %v702, %v701
        %v706 = vld [vmem:[#allocation5] sm:$0xf]
        %v707 = vld [vmem:[#allocation5 + $0x4] sm:$0xf]
        %v708 = vld [vmem:[#allocation5 + $0x8] sm:$0xf]
        %v709 = vld [vmem:[#allocation5 + $0xc] sm:$0xf]
        %v710 = vld [vmem:[#allocation5 + $0x10] sm:$0xf]
        %v711 = vld [vmem:[#allocation5 + $0x14] sm:$0xf]
        %v712 = vld [vmem:[#allocation5 + $0x18] sm:$0xf]
        %v713 = vld [vmem:[#allocation5 + $0x1c] sm:$0xf]
        %v714 = vld [vmem:[#allocation5 + $0x20] sm:$0xf]
        %v715 = vld [vmem:[#allocation5 + $0x24] sm:$0xf]
        %v716 = vld [vmem:[#allocation5 + $0x28] sm:$0xf]
        %v717 = vld [vmem:[#allocation5 + $0x2c] sm:$0xf]
        %v718 = vld [vmem:[#allocation5 + $0x30] sm:$0xf]
        %v719 = vld [vmem:[#allocation5 + $0x34] sm:$0xf]
        %v720 = vld [vmem:[#allocation5 + $0x38] sm:$0xf]
        %v721 = vld [vmem:[#allocation5 + $0x3c] sm:$0xf]
        %v722 = vld [vmem:[#allocation5 + $0x40] sm:$0xf]
        %v723 = vld [vmem:[#allocation5 + $0x44] sm:$0xf]
        %v724 = vld [vmem:[#allocation5 + $0x48] sm:$0xf]
        %v725 = vld [vmem:[#allocation5 + $0x4c] sm:$0xf]
        %v726 = vld [vmem:[#allocation5 + $0x50] sm:$0xf]
        %v727 = vld [vmem:[#allocation5 + $0x54] sm:$0xf]
        %v728 = vld [vmem:[#allocation5 + $0x58] sm:$0xf]
        %v729 = vld [vmem:[#allocation5 + $0x5c] sm:$0xf]
        %v730 = vld [vmem:[#allocation5 + $0x60] sm:$0xf]
        %v731 = vld [vmem:[#allocation5 + $0x64] sm:$0xf]
        %v732 = vld [vmem:[#allocation5 + $0x68] sm:$0xf]
        %v733 = vld [vmem:[#allocation5 + $0x6c] sm:$0xf]
        %v734 = vld [vmem:[#allocation5 + $0x70] sm:$0xf]
        %v735 = vld [vmem:[#allocation5 + $0x74] sm:$0xf]
        %v736 = vld [vmem:[#allocation5 + $0x78] sm:$0xf]
        %v737 = vld [vmem:[#allocation5 + $0x7c] sm:$0xf]
        %v738 = vld [vmem:[#allocation5 + $0x80] sm:$0xf]
        %v739 = vld [vmem:[#allocation5 + $0x84] sm:$0xf]
        %v740 = vld [vmem:[#allocation5 + $0x88] sm:$0xf]
        %v741 = vld [vmem:[#allocation5 + $0x8c] sm:$0xf]
        %v742 = vld [vmem:[#allocation5 + $0x90] sm:$0xf]
        %v743 = vld [vmem:[#allocation5 + $0x94] sm:$0xf]
        %v744 = vld [vmem:[#allocation5 + $0x98] sm:$0xf]
        %v745 = vld [vmem:[#allocation5 + $0x9c] sm:$0xf]
        %v746 = vld [vmem:[#allocation5 + $0xa0] sm:$0xf]
        %v747 = vld [vmem:[#allocation5 + $0xa4] sm:$0xf]
        %v748 = vld [vmem:[#allocation5 + $0xa8] sm:$0xf]
        %v749 = vld [vmem:[#allocation5 + $0xac] sm:$0xf]
        %v750 = vld [vmem:[#allocation5 + $0xb0] sm:$0xf]
        %v751 = vld [vmem:[#allocation5 + $0xb4] sm:$0xf]
        %v752 = vld [vmem:[#allocation5 + $0xb8] sm:$0xf]
        %v753 = vld [vmem:[#allocation5 + $0xbc] sm:$0xf]
        %v754 = vld [vmem:[%s4] sm:$0x1]
        %v756 = vlaneseq
        %v757 = vshrl.u32 %v756, 7
        %v758 = vsub.s32 0, %v757
        %v759 = vrot.slane %v754, %v758
        %v809 = vunpack.c.l.b16 %v706
        %v810 = vunpack.c.l.b16 %v707
        %v811 = vunpack.c.l.b16 %v708
        %v812 = vunpack.c.l.b16 %v709
        %v813 = vunpack.c.l.b16 %v710
        %v814 = vunpack.c.l.b16 %v711
        %v815 = vunpack.c.l.b16 %v712
        %v816 = vunpack.c.l.b16 %v713
        %v817 = vunpack.c.l.b16 %v714
        %v818 = vunpack.c.l.b16 %v715
        %v819 = vunpack.c.l.b16 %v716
        %v820 = vunpack.c.l.b16 %v717
        %v821 = vunpack.c.l.b16 %v718
        %v822 = vunpack.c.l.b16 %v719
        %v823 = vunpack.c.l.b16 %v720
        %v824 = vunpack.c.l.b16 %v721
        %v825 = vunpack.c.l.b16 %v722
        %v826 = vunpack.c.l.b16 %v723
        %v827 = vunpack.c.l.b16 %v724
        %v828 = vunpack.c.l.b16 %v725
        %v829 = vunpack.c.l.b16 %v726
        %v830 = vunpack.c.l.b16 %v727
        %v831 = vunpack.c.l.b16 %v728
        %v832 = vunpack.c.l.b16 %v729
        %v833 = vunpack.c.l.b16 %v730
        %v834 = vunpack.c.l.b16 %v731
        %v835 = vunpack.c.l.b16 %v732
        %v836 = vunpack.c.l.b16 %v733
        %v837 = vunpack.c.l.b16 %v734
        %v838 = vunpack.c.l.b16 %v735
        %v839 = vunpack.c.l.b16 %v736
        %v840 = vunpack.c.l.b16 %v737
        %v841 = vunpack.c.l.b16 %v738
        %v842 = vunpack.c.l.b16 %v739
        %v843 = vunpack.c.l.b16 %v740
        %v844 = vunpack.c.l.b16 %v741
        %v845 = vunpack.c.l.b16 %v742
        %v846 = vunpack.c.l.b16 %v743
        %v847 = vunpack.c.l.b16 %v744
        %v848 = vunpack.c.l.b16 %v745
        %v849 = vunpack.c.l.b16 %v746
        %v850 = vunpack.c.l.b16 %v747
        %v851 = vunpack.c.l.b16 %v748
        %v852 = vunpack.c.l.b16 %v749
        %v853 = vunpack.c.l.b16 %v750
        %v854 = vunpack.c.l.b16 %v751
        %v855 = vunpack.c.l.b16 %v752
        %v856 = vunpack.c.l.b16 %v753
        %v857 = vpack.c.b16 %v810, %v809
        %v858 = vpack.c.b16 %v812, %v811
        %v859 = vpack.c.b16 %v814, %v813
        %v860 = vpack.c.b16 %v816, %v815
        %v861 = vpack.c.b16 %v818, %v817
        %v862 = vpack.c.b16 %v820, %v819
        %v863 = vpack.c.b16 %v822, %v821
        %v864 = vpack.c.b16 %v824, %v823
        %v865 = vpack.c.b16 %v826, %v825
        %v866 = vpack.c.b16 %v828, %v827
        %v867 = vpack.c.b16 %v830, %v829
        %v868 = vpack.c.b16 %v832, %v831
        %v869 = vpack.c.b16 %v834, %v833
        %v870 = vpack.c.b16 %v836, %v835
        %v871 = vpack.c.b16 %v838, %v837
        %v872 = vpack.c.b16 %v840, %v839
        %v873 = vpack.c.b16 %v842, %v841
        %v874 = vpack.c.b16 %v844, %v843
        %v875 = vpack.c.b16 %v846, %v845
        %v876 = vpack.c.b16 %v848, %v847
        %v877 = vpack.c.b16 %v850, %v849
        %v878 = vpack.c.b16 %v852, %v851
        %v879 = vpack.c.b16 %v854, %v853
        %v880 = vpack.c.b16 %v856, %v855
        %905 = vmatprep.subr.bf16.mxu0 0
        %906 = vmatpush1.bf16.msra.mxu0 %v857
        %907 = vmatprep.subr.bf16.mxu0 0
        %908 = vmatpush1.bf16.msra.mxu0 %v858
        %909 = vmatprep.subr.bf16.mxu0 0
        %910 = vmatpush1.bf16.msra.mxu0 %v859
        %911 = vmatprep.subr.bf16.mxu0 0
        %912 = vmatpush1.bf16.msra.mxu0 %v860
        %913 = vmatprep.subr.bf16.mxu0 0
        %914 = vmatpush1.bf16.msra.mxu0 %v861
        %915 = vmatprep.subr.bf16.mxu0 0
        %916 = vmatpush1.bf16.msra.mxu0 %v862
        %917 = vmatprep.subr.bf16.mxu0 0
        %918 = vmatpush1.bf16.msra.mxu0 %v863
        %919 = vmatprep.subr.bf16.mxu0 0
        %920 = vmatpush1.bf16.msra.mxu0 %v864
        %921 = vmatprep.subr.bf16.mxu0 0
        %922 = vmatpush1.bf16.msra.mxu0 %v865
        %923 = vmatprep.subr.bf16.mxu0 0
        %924 = vmatpush1.bf16.msra.mxu0 %v866
        %925 = vmatprep.subr.bf16.mxu0 0
        %926 = vmatpush1.bf16.msra.mxu0 %v867
        %927 = vmatprep.subr.bf16.mxu0 0
        %928 = vmatpush1.bf16.msra.mxu0 %v868
        %929 = vmatprep.subr.bf16.mxu0 0
        %930 = vmatpush1.bf16.msra.mxu0 %v869
        %931 = vmatprep.subr.bf16.mxu0 0
        %932 = vmatpush1.bf16.msra.mxu0 %v870
        %933 = vmatprep.subr.bf16.mxu0 0
        %934 = vmatpush1.bf16.msra.mxu0 %v871
        %935 = vmatprep.subr.bf16.mxu0 0
        %936 = vmatpush1.bf16.msra.mxu0 %v872
        %937 = vmatprep.mubr.bf16.mxu0 %v704
        %938 = vmatmul.mubr.bf16.gmra.mrb[0].mxu0 %v703
        %v939 = vpop.f32.mrb[0].mxu0
        %v940 = vadd.f32 %v759, %v939
        %v941 = vpop.f32.mrb[0].mxu0
        %v942 = vpop.f32.mrb[0].mxu0
        %v943 = vadd.f32 %v759, %v942
        %v944 = vpop.f32.mrb[0].mxu0
        %945 = vdwg.mxu0
        %946 = vmatprep.subr.bf16.mxu0 0
        %947 = vmatpush1.bf16.msra.mxu0 %v873
        %948 = vmatprep.subr.bf16.mxu0 0
        %949 = vmatpush1.bf16.msra.mxu0 %v874
        %950 = vmatprep.subr.bf16.mxu0 0
        %951 = vmatpush1.bf16.msra.mxu0 %v875
        %952 = vmatprep.subr.bf16.mxu0 0
        %953 = vmatpush1.bf16.msra.mxu0 %v876
        %954 = vmatprep.subr.bf16.mxu0 0
        %955 = vmatpush1.bf16.msra.mxu0 %v877
        %956 = vmatprep.subr.bf16.mxu0 0
        %957 = vmatpush1.bf16.msra.mxu0 %v878
        %958 = vmatprep.subr.bf16.mxu0 0
        %959 = vmatpush1.bf16.msra.mxu0 %v879
        %960 = vmatprep.subr.bf16.mxu0 0
        %961 = vmatpush1.bf16.msra.mxu0 %v880
        %962 = vmatprep.subr.bf16.mxu0 0
        %963 = vmatpush1.bf16.msra.mxu0 0
        %964 = vmatprep.subr.bf16.mxu0 0
        %965 = vmatpush1.bf16.msra.mxu0 0
        %966 = vmatprep.subr.bf16.mxu0 0
        %967 = vmatpush1.bf16.msra.mxu0 0
        %968 = vmatprep.subr.bf16.mxu0 0
        %969 = vmatpush1.bf16.msra.mxu0 0
        %970 = vmatprep.subr.bf16.mxu0 0
        %971 = vmatpush1.bf16.msra.mxu0 0
        %972 = vmatprep.subr.bf16.mxu0 0
        %973 = vmatpush1.bf16.msra.mxu0 0
        %974 = vmatprep.subr.bf16.mxu0 0
        %975 = vmatpush1.bf16.msra.mxu0 0
        %976 = vmatprep.subr.bf16.mxu0 0
        %977 = vmatpush1.bf16.msra.mxu0 0
        %978 = vmatprep.mubr.bf16.mxu0 0
        %979 = vmatmul.mubr.bf16.gmra.mrb[0].mxu0 %v705
        %v980 = vpop.f32.mrb[0].mxu0
        %v981 = vadd.f32 %v940, %v980
        %v982 = vpop.f32.mrb[0].mxu0
        %v983 = vpop.f32.mrb[0].mxu0
        %v984 = vadd.f32 %v943, %v983
        %v985 = vpop.f32.mrb[0].mxu0
        %986 = vdwg.mxu0
        %v987 = vmul.f32 %v981, %v981
        %v988 = vmul.f32 %v984, %v984
        %v989 = vmul.f32 %v981, %v987
        %v990 = vmul.f32 %v984, %v988
        %v991 = vmul.f32 %v989, 0.044715
        %v992 = vmul.f32 %v990, 0.044715
        %v993 = vadd.f32 %v981, %v991
        %v994 = vadd.f32 %v984, %v992
        %v995 = vmul.f32 %v993, 0.7978846
        %v996 = vmul.f32 %v994, 0.7978846
        %v997 = vtanh.pop %v995
        %v998 = vtanh.pop %v996
        %v999 = vadd.f32 %v997, 1.0
        %v1000 = vadd.f32 %v998, 1.0
        %v1001 = vmul.f32 %v999, 0.5
        %v1002 = vmul.f32 %v1000, 0.5
        %v1003 = vmul.f32 %v981, %v1001
        %v1004 = vmul.f32 %v984, %v1002
        %v1005 = vrot.slane %v1003, 7
        %v1006 = vrot.slane %v1004, 7
        %v1007 = vsel %vm369, %v1005, %v1006
        %v1008 = vsel %vm369, %v1006, %v1005
        %v1009 = vsel %vm374, %v1008, 0.0
        %v1010 = vsel %vm375, %v1007, 0.0
        %v1011 = vrot.slane %v1003, 1
        %v1012 = vrot.slane %v1004, 1
        %v1013 = vsel %vm380, %v1011, %v1012
        %v1014 = vsel %vm380, %v1012, %v1011
        %v1015 = vsel %vm385, %v1013, 0.0
        %v1016 = vsel %vm386, %v1014, 0.0
        %v1017 = vpack.c.bf16 %v1010, %v1009
        %v1018 = vpack.c.bf16 %v1004, %v1003
        %v1019 = vpack.c.bf16 %v1016, %v1015
        %v1020 = vld [vmem:[#allocation7] sm:$0xf]
        %v1021 = vld [vmem:[#allocation7 + $0x4] sm:$0xf]
        %v1022 = vld [vmem:[#allocation7 + $0x8] sm:$0xf]
        %v1023 = vld [vmem:[#allocation7 + $0xc] sm:$0xf]
        %v1024 = vld [vmem:[#allocation7 + $0x10] sm:$0xf]
        %v1025 = vld [vmem:[#allocation7 + $0x14] sm:$0xf]
        %v1026 = vld [vmem:[#allocation7 + $0x18] sm:$0xf]
        %v1027 = vld [vmem:[#allocation7 + $0x1c] sm:$0xf]
        %v1028 = vld [vmem:[#allocation7 + $0x20] sm:$0xf]
        %v1029 = vld [vmem:[#allocation7 + $0x24] sm:$0xf]
        %v1030 = vld [vmem:[#allocation7 + $0x28] sm:$0xf]
        %v1031 = vld [vmem:[#allocation7 + $0x2c] sm:$0xf]
        %v1032 = vld [vmem:[#allocation7 + $0x30] sm:$0xf]
        %v1033 = vld [vmem:[#allocation7 + $0x34] sm:$0xf]
        %v1034 = vld [vmem:[#allocation7 + $0x38] sm:$0xf]
        %v1035 = vld [vmem:[#allocation7 + $0x3c] sm:$0xf]
        %v1036 = vld [vmem:[#allocation7 + $0x40] sm:$0xf]
        %v1037 = vld [vmem:[#allocation7 + $0x44] sm:$0xf]
        %v1038 = vld [vmem:[#allocation7 + $0x48] sm:$0xf]
        %v1039 = vld [vmem:[#allocation7 + $0x4c] sm:$0xf]
        %v1040 = vld [vmem:[#allocation7 + $0x50] sm:$0xf]
        %v1041 = vld [vmem:[#allocation7 + $0x54] sm:$0xf]
        %v1042 = vld [vmem:[#allocation7 + $0x58] sm:$0xf]
        %v1043 = vld [vmem:[#allocation7 + $0x5c] sm:$0xf]
        %v1044 = vld [vmem:[#allocation7 + $0x60] sm:$0xf]
        %v1045 = vld [vmem:[#allocation7 + $0x64] sm:$0xf]
        %v1046 = vld [vmem:[#allocation7 + $0x68] sm:$0xf]
        %v1047 = vld [vmem:[#allocation7 + $0x6c] sm:$0xf]
        %v1048 = vld [vmem:[#allocation7 + $0x70] sm:$0xf]
        %v1049 = vld [vmem:[#allocation7 + $0x74] sm:$0xf]
        %v1050 = vld [vmem:[#allocation7 + $0x78] sm:$0xf]
        %v1051 = vld [vmem:[#allocation7 + $0x7c] sm:$0xf]
        %v1052 = vld [vmem:[#allocation7 + $0x80] sm:$0xf]
        %v1053 = vld [vmem:[#allocation7 + $0x84] sm:$0xf]
        %v1054 = vld [vmem:[#allocation7 + $0x88] sm:$0xf]
        %v1055 = vld [vmem:[#allocation7 + $0x8c] sm:$0xf]
        %v1056 = vld [vmem:[#allocation7 + $0x90] sm:$0xf]
        %v1057 = vld [vmem:[#allocation7 + $0x94] sm:$0xf]
        %v1058 = vld [vmem:[#allocation7 + $0x98] sm:$0xf]
        %v1059 = vld [vmem:[#allocation7 + $0x9c] sm:$0xf]
        %v1060 = vld [vmem:[#allocation7 + $0xa0] sm:$0xf]
        %v1061 = vld [vmem:[#allocation7 + $0xa4] sm:$0xf]
        %v1062 = vld [vmem:[#allocation7 + $0xa8] sm:$0xf]
        %v1063 = vld [vmem:[#allocation7 + $0xac] sm:$0xf]
        %v1064 = vld [vmem:[#allocation7 + $0xb0] sm:$0xf]
        %v1065 = vld [vmem:[#allocation7 + $0xb4] sm:$0xf]
        %v1066 = vld [vmem:[#allocation7 + $0xb8] sm:$0xf]
        %v1067 = vld [vmem:[#allocation7 + $0xbc] sm:$0xf]
        %v1068 = vld [vmem:[%s6] sm:$0x1]
        %v1070 = vlaneseq
        %v1071 = vshrl.u32 %v1070, 7
        %v1072 = vsub.s32 0, %v1071
        %v1073 = vrot.slane %v1068, %v1072
        %v1123 = vunpack.c.l.b16 %v1020
        %v1124 = vunpack.c.l.b16 %v1021
        %v1125 = vunpack.c.l.b16 %v1022
        %v1126 = vunpack.c.l.b16 %v1023
        %v1127 = vunpack.c.l.b16 %v1024
        %v1128 = vunpack.c.l.b16 %v1025
        %v1129 = vunpack.c.l.b16 %v1026
        %v1130 = vunpack.c.l.b16 %v1027
        %v1131 = vunpack.c.l.b16 %v1028
        %v1132 = vunpack.c.l.b16 %v1029
        %v1133 = vunpack.c.l.b16 %v1030
        %v1134 = vunpack.c.l.b16 %v1031
        %v1135 = vunpack.c.l.b16 %v1032
        %v1136 = vunpack.c.l.b16 %v1033
        %v1137 = vunpack.c.l.b16 %v1034
        %v1138 = vunpack.c.l.b16 %v1035
        %v1139 = vunpack.c.l.b16 %v1036
        %v1140 = vunpack.c.l.b16 %v1037
        %v1141 = vunpack.c.l.b16 %v1038
        %v1142 = vunpack.c.l.b16 %v1039
        %v1143 = vunpack.c.l.b16 %v1040
        %v1144 = vunpack.c.l.b16 %v1041
        %v1145 = vunpack.c.l.b16 %v1042
        %v1146 = vunpack.c.l.b16 %v1043
        %v1147 = vunpack.c.l.b16 %v1044
        %v1148 = vunpack.c.l.b16 %v1045
        %v1149 = vunpack.c.l.b16 %v1046
        %v1150 = vunpack.c.l.b16 %v1047
        %v1151 = vunpack.c.l.b16 %v1048
        %v1152 = vunpack.c.l.b16 %v1049
        %v1153 = vunpack.c.l.b16 %v1050
        %v1154 = vunpack.c.l.b16 %v1051
        %v1155 = vunpack.c.l.b16 %v1052
        %v1156 = vunpack.c.l.b16 %v1053
        %v1157 = vunpack.c.l.b16 %v1054
        %v1158 = vunpack.c.l.b16 %v1055
        %v1159 = vunpack.c.l.b16 %v1056
        %v1160 = vunpack.c.l.b16 %v1057
        %v1161 = vunpack.c.l.b16 %v1058
        %v1162 = vunpack.c.l.b16 %v1059
        %v1163 = vunpack.c.l.b16 %v1060
        %v1164 = vunpack.c.l.b16 %v1061
        %v1165 = vunpack.c.l.b16 %v1062
        %v1166 = vunpack.c.l.b16 %v1063
        %v1167 = vunpack.c.l.b16 %v1064
        %v1168 = vunpack.c.l.b16 %v1065
        %v1169 = vunpack.c.l.b16 %v1066
        %v1170 = vunpack.c.l.b16 %v1067
        %v1171 = vpack.c.b16 %v1124, %v1123
        %v1172 = vpack.c.b16 %v1126, %v1125
        %v1173 = vpack.c.b16 %v1128, %v1127
        %v1174 = vpack.c.b16 %v1130, %v1129
        %v1175 = vpack.c.b16 %v1132, %v1131
        %v1176 = vpack.c.b16 %v1134, %v1133
        %v1177 = vpack.c.b16 %v1136, %v1135
        %v1178 = vpack.c.b16 %v1138, %v1137
        %v1179 = vpack.c.b16 %v1140, %v1139
        %v1180 = vpack.c.b16 %v1142, %v1141
        %v1181 = vpack.c.b16 %v1144, %v1143
        %v1182 = vpack.c.b16 %v1146, %v1145
        %v1183 = vpack.c.b16 %v1148, %v1147
        %v1184 = vpack.c.b16 %v1150, %v1149
        %v1185 = vpack.c.b16 %v1152, %v1151
        %v1186 = vpack.c.b16 %v1154, %v1153
        %v1187 = vpack.c.b16 %v1156, %v1155
        %v1188 = vpack.c.b16 %v1158, %v1157
        %v1189 = vpack.c.b16 %v1160, %v1159
        %v1190 = vpack.c.b16 %v1162, %v1161
        %v1191 = vpack.c.b16 %v1164, %v1163
        %v1192 = vpack.c.b16 %v1166, %v1165
        %v1193 = vpack.c.b16 %v1168, %v1167
        %v1194 = vpack.c.b16 %v1170, %v1169
        %1219 = vmatprep.subr.bf16.mxu0 0
        %1220 = vmatpush1.bf16.msra.mxu0 %v1171
        %1221 = vmatprep.subr.bf16.mxu0 0
        %1222 = vmatpush1.bf16.msra.mxu0 %v1172
        %1223 = vmatprep.subr.bf16.mxu0 0
        %1224 = vmatpush1.bf16.msra.mxu0 %v1173
        %1225 = vmatprep.subr.bf16.mxu0 0
        %1226 = vmatpush1.bf16.msra.mxu0 %v1174
        %1227 = vmatprep.subr.bf16.mxu0 0
        %1228 = vmatpush1.bf16.msra.mxu0 %v1175
        %1229 = vmatprep.subr.bf16.mxu0 0
        %1230 = vmatpush1.bf16.msra.mxu0 %v1176
        %1231 = vmatprep.subr.bf16.mxu0 0
        %1232 = vmatpush1.bf16.msra.mxu0 %v1177
        %1233 = vmatprep.subr.bf16.mxu0 0
        %1234 = vmatpush1.bf16.msra.mxu0 %v1178
        %1235 = vmatprep.subr.bf16.mxu0 0
        %1236 = vmatpush1.bf16.msra.mxu0 %v1179
        %1237 = vmatprep.subr.bf16.mxu0 0
        %1238 = vmatpush1.bf16.msra.mxu0 %v1180
        %1239 = vmatprep.subr.bf16.mxu0 0
        %1240 = vmatpush1.bf16.msra.mxu0 %v1181
        %1241 = vmatprep.subr.bf16.mxu0 0
        %1242 = vmatpush1.bf16.msra.mxu0 %v1182
        %1243 = vmatprep.subr.bf16.mxu0 0
        %1244 = vmatpush1.bf16.msra.mxu0 %v1183
        %1245 = vmatprep.subr.bf16.mxu0 0
        %1246 = vmatpush1.bf16.msra.mxu0 %v1184
        %1247 = vmatprep.subr.bf16.mxu0 0
        %1248 = vmatpush1.bf16.msra.mxu0 %v1185
        %1249 = vmatprep.subr.bf16.mxu0 0
        %1250 = vmatpush1.bf16.msra.mxu0 %v1186
        %1251 = vmatprep.mubr.bf16.mxu0 %v1018
        %1252 = vmatmul.mubr.bf16.gmra.mrb[0].mxu0 %v1017
        %v1253 = vpop.f32.mrb[0].mxu0
        %v1254 = vadd.f32 %v1073, %v1253
        %v1255 = vpop.f32.mrb[0].mxu0
        %v1256 = vpop.f32.mrb[0].mxu0
        %v1257 = vadd.f32 %v1073, %v1256
        %v1258 = vpop.f32.mrb[0].mxu0
        %1259 = vdwg.mxu0
        %1260 = vmatprep.subr.bf16.mxu0 0
        %1261 = vmatpush1.bf16.msra.mxu0 %v1187
        %1262 = vmatprep.subr.bf16.mxu0 0
        %1263 = vmatpush1.bf16.msra.mxu0 %v1188
        %1264 = vmatprep.subr.bf16.mxu0 0
        %1265 = vmatpush1.bf16.msra.mxu0 %v1189
        %1266 = vmatprep.subr.bf16.mxu0 0
        %1267 = vmatpush1.bf16.msra.mxu0 %v1190
        %1268 = vmatprep.subr.bf16.mxu0 0
        %1269 = vmatpush1.bf16.msra.mxu0 %v1191
        %1270 = vmatprep.subr.bf16.mxu0 0
        %1271 = vmatpush1.bf16.msra.mxu0 %v1192
        %1272 = vmatprep.subr.bf16.mxu0 0
        %1273 = vmatpush1.bf16.msra.mxu0 %v1193
        %1274 = vmatprep.subr.bf16.mxu0 0
        %1275 = vmatpush1.bf16.msra.mxu0 %v1194
        %1276 = vmatprep.subr.bf16.mxu0 0
        %1277 = vmatpush1.bf16.msra.mxu0 0
        %1278 = vmatprep.subr.bf16.mxu0 0
        %1279 = vmatpush1.bf16.msra.mxu0 0
        %1280 = vmatprep.subr.bf16.mxu0 0
        %1281 = vmatpush1.bf16.msra.mxu0 0
        %1282 = vmatprep.subr.bf16.mxu0 0
        %1283 = vmatpush1.bf16.msra.mxu0 0
        %1284 = vmatprep.subr.bf16.mxu0 0
        %1285 = vmatpush1.bf16.msra.mxu0 0
        %1286 = vmatprep.subr.bf16.mxu0 0
        %1287 = vmatpush1.bf16.msra.mxu0 0
        %1288 = vmatprep.subr.bf16.mxu0 0
        %1289 = vmatpush1.bf16.msra.mxu0 0
        %1290 = vmatprep.subr.bf16.mxu0 0
        %1291 = vmatpush1.bf16.msra.mxu0 0
        %1292 = vmatprep.mubr.bf16.mxu0 0
        %1293 = vmatmul.mubr.bf16.gmra.mrb[0].mxu0 %v1019
        %v1294 = vpop.f32.mrb[0].mxu0
        %v1295 = vadd.f32 %v1254, %v1294
        %v1296 = vpop.f32.mrb[0].mxu0
        %v1297 = vpop.f32.mrb[0].mxu0
        %v1298 = vadd.f32 %v1257, %v1297
        %v1299 = vpop.f32.mrb[0].mxu0
        %1300 = vdwg.mxu0
        %1301 = vst.msk [vmem:[%s324] sm:$0xff] %vm362, %v1295
        %1302 = vst.msk [vmem:[%s324 + $0x8] sm:$0xff] %vm362, %v1298
        %s1303 = smul.u32 2, %s20
        %p1304 = scmp.lt.s32.totalorder %s1303, 3
        %s1305 = scalar_select %p1304, %s1303, 3
        %s1306 = smul.addr %s1305, 8
        %s1307 = scalar_lea.vmem %s7, %s1306
        // Predicated region
        $region61: #{tpu_custom_call.1} parent=47 // pred_check
          %p1308 = pneg %p190
        $region62: #{tpu_custom_call.1} parent=47 // pred_check_branch
          %1310 = sbr.rel (%p1308) target = $region64
        $region63: #{tpu_custom_call.1} parent=47 // pred_region
          %s1311 = smul.u32 2, %s20
        $region64: #{tpu_custom_call.1} parent=47 // pred_fallthru
          _
      $region48: #{tpu_custom_call.1} parent=5 // pred_fallthru
        _
      %p1312 = scmp.le.s32.totalorder 2, %s15
      // Predicated region
      $region65: #{tpu_custom_call.1} parent=5 // pred_check
        %p1313 = pneg %p1312
      $region66: #{tpu_custom_call.1} parent=5 // pred_check_branch
        %1315 = sbr.rel (%p1313) target = $region68
      $region67: #{tpu_custom_call.1} parent=5 // pred_region
        %s1316 = ssub.s32 %s15, 2
        // Predicated region
        $region69: #{tpu_custom_call.1} parent=67 // pred_check
          %p1317 = pneg %p196
        $region70: #{tpu_custom_call.1} parent=67 // pred_check_branch
          %1319 = sbr.rel (%p1317) target = $region72
        $region71: #{tpu_custom_call.1} parent=67 // pred_region
          %s1320 = smul.u32 2, %s21
          %p1321 = scmp.lt.s32.totalorder %s1320, 3
          %s1322 = scalar_select %p1321, %s1320, 3
          %s1323 = smul.addr %s1322, 8
          %s1324 = scalar_lea.vmem %s7, %s1323
        $region72: #{tpu_custom_call.1} parent=67 // pred_fallthru
          _
      $region68: #{tpu_custom_call.1} parent=5 // pred_fallthru
        _
    $region6: #{tpu_custom_call.1} parent=1 // loop_footer
      %s19 = sadd.s32 1, %s15
    $region7: #{tpu_custom_call.1} parent=1 // loop_footer_branch
      %14 = sbr.rel target = $region3
    $region8: #{tpu_custom_call.1} parent=1 // loop_exit
      _
    %1325 = vsyncpa [#allocation4], 1
    %s1326 = scalar_lea.sflag [#allocation4], 1
    %1327 = vsyncpa %s1326, 1
    %1328 = vsyncpa [#allocation6], 1

// kernel: tpu_custom_call.1
$region0: #{tpu_custom_call.1}
  #allocation0 [shape = 'u32[]', space=smem, size = 0x4, offset = 0x4, fixed_abs, tag = 'smem constant byte address 0x4 - core index']
  #allocation1 [shape = 'u32[144,128]{1,0:T(1,128)}', space=vmem, size = 0x12000, scoped, tag = 'internal scratch']
  #allocation2 [shape = 'f32[16,128]{1,0:T(8,128)}', space=vmem, size = 0x2000, scoped, tag = 'scratch operand']
  %s0 = inlined_call_operand.vmem [shape: f32[32,12], index: 0, kind: input, shape index: {}]
  %s1 = inlined_call_operand.hbm [shape: bf16[384,128], index: 1, kind: input, shape index: {}]
  %s2 = inlined_call_operand.vmem [shape: f32[1,128], index: 2, kind: input, shape index: {}]
  %s3 = inlined_call_operand.hbm [shape: bf16[384,128], index: 3, kind: input, shape index: {}]
  %s4 = inlined_call_operand.vmem [shape: f32[1,128], index: 4, kind: input, shape index: {}]
  %s5 = inlined_call_operand.hbm [shape: bf16[384,128], index: 5, kind: input, shape index: {}]
  %s6 = inlined_call_operand.vmem [shape: f32[1,128], index: 6, kind: input, shape index: {}]
  %s7 = inlined_call_operand.vmem [shape: f32[32,12], index: 7, kind: output, shape index: {}]
  %s8 = sld [smem:[#allocation0]]
  $region73: #{tpu_custom_call.1} parent=0
    _
  %s10 = ssub.s32 1, %s8
  %s11 = scalar_select 0, %s10, %s8
  $region1: #{tpu_custom_call.1} parent=0
    #allocation3 [shape = 'u8[98304]{0}', space=vmem, size = 0x18000, scoped, tag = 'input window, operand 1, single buffered']
    #allocation4 [shape = 's32[2]{0}', space=sflag, size = 0x8, scoped, tag = 'scoped memory for tpu_custom_call.1']
    #allocation5 [shape = 'u8[98304]{0}', space=vmem, size = 0x18000, scoped, tag = 'input window, operand 3, single buffered']
    #allocation6 [shape = 's32[1]{0}', space=sflag, size = 0x4, scoped, tag = 'scoped memory for tpu_custom_call.1']
    #allocation7 [shape = 'u8[98304]{0}', space=vmem, size = 0x18000, scoped, tag = 'input window, operand 5, single buffered']
    %12 = vsyncpa [#allocation4], 0
    %13 = vsyncpa [#allocation6], 0
    loop: start=0, step=1, limit=4
    $region2: #{tpu_custom_call.1} parent=1 // loop_pre_header
      _
    $region3: #{tpu_custom_call.1} parent=1 // loop_header
      %s15 = sphi 0, %s19
      %p16 = scmp.ge.s32.totalorder %s15, 4
      %s25 = sphi 0, %s27
      %s28 = sphi 0, %s25
      %s29 = sphi 0, %s28
      %s45 = sphi 0, %s29
      %s49 = sphi 0, %s49
      %s51 = sphi 0, %s49
      %s52 = sphi 0, %s51
      %s66 = sphi 0, %s52
      %s70 = sphi 0, %s70
      %s72 = sphi 0, %s70
      %s73 = sphi 0, %s72
      %s87 = sphi 0, %s73
      %s91 = sphi 0, %s91
      %s93 = sphi 0, %s91
      %s94 = sphi 0, %s93
      %s108 = sphi 0, %s94
      %s112 = sphi 0, %s112
      %s114 = sphi 0, %s112
      %s115 = sphi 0, %s114
      %s129 = sphi 0, %s115
      %s133 = sphi 0, %s133
      %s135 = sphi 0, %s133
      %s136 = sphi 0, %s135
      %s150 = sphi 0, %s136
      %s154 = sphi 0, %s154
      %s156 = sphi 0, %s154
      %s157 = sphi 0, %s156
      %s171 = sphi 0, %s157
      %s177 = sphi 0, %s179
      %s180 = sphi 0, %s177
      %s181 = sphi 0, %s180
      %s197 = sphi 0, %s181
    $region4: #{tpu_custom_call.1} parent=1 // loop_header_branch
      %18 = sbr.rel (%p16) target = $region8
    $region5: #{tpu_custom_call.1} parent=1 // loop_body
      %s20 = ssub.s32 %s15, 1
      %s21 = ssub.s32 %s15, 2
      %s22 = sadd.s32 %s15, 1
      %s23 = ssub.s32 %s15, %s22
      %p24 = scmp.eq.s32.totalorder %s23, 0
      %s26 = sadd.s32 %s25, 1
      %s27 = scalar_select %p24, %s25, %s26
      %p30 = pneg %p24
      %p31 = scmp.eq.s32.totalorder %s15, 1
      %p32 = por %p30, %p31
      %p33 = scmp.ne.s32.totalorder %s25, %s28
      %p34 = scmp.eq.s32.totalorder %s15, 0
      %p35 = por %p33, %p34
      %p36 = scmp.ne.s32.totalorder %s25, %s28
      %p37 = scmp.eq.s32.totalorder %s20, 1
      %p38 = por %p36, %p37
      %p39 = scmp.ne.s32.totalorder %s28, %s29
      %p40 = scmp.eq.s32.totalorder %s20, 0
      %p41 = por %p39, %p40
      %p42 = scmp.ne.s32.totalorder %s28, %s29
      %p43 = scmp.eq.s32.totalorder %s21, 1
      %p44 = por %p42, %p43
      %p46 = scmp.ne.s32.totalorder %s29, %s45
      %p47 = scmp.eq.s32.totalorder %s21, 0
      %p48 = por %p46, %p47
      %s50 = sadd.s32 %s49, 1
      %p53 = scmp.eq.s32.totalorder %s15, 1
      %p54 = scmp.ne.s32.totalorder %s49, %s51
      %p55 = scmp.eq.s32.totalorder %s15, 0
      %p56 = por %p54, %p55
      %p57 = scmp.ne.s32.totalorder %s49, %s51
      %p58 = scmp.eq.s32.totalorder %s20, 1
      %p59 = por %p57, %p58
      %p60 = scmp.ne.s32.totalorder %s51, %s52
      %p61 = scmp.eq.s32.totalorder %s20, 0
      %p62 = por %p60, %p61
      %p63 = scmp.ne.s32.totalorder %s51, %s52
      %p64 = scmp.eq.s32.totalorder %s21, 1
      %p65 = por %p63, %p64
      %p67 = scmp.ne.s32.totalorder %s52, %s66
      %p68 = scmp.eq.s32.totalorder %s21, 0
      %p69 = por %p67, %p68
      %s71 = sadd.s32 %s70, 1
      %p74 = scmp.eq.s32.totalorder %s15, 1
      %p75 = scmp.ne.s32.totalorder %s70, %s72
      %p76 = scmp.eq.s32.totalorder %s15, 0
      %p77 = por %p75, %p76
      %p78 = scmp.ne.s32.totalorder %s70, %s72
      %p79 = scmp.eq.s32.totalorder %s20, 1
      %p80 = por %p78, %p79
      %p81 = scmp.ne.s32.totalorder %s72, %s73
      %p82 = scmp.eq.s32.totalorder %s20, 0
      %p83 = por %p81, %p82
      %p84 = scmp.ne.s32.totalorder %s72, %s73
      %p85 = scmp.eq.s32.totalorder %s21, 1
      %p86 = por %p84, %p85
      %p88 = scmp.ne.s32.totalorder %s73, %s87
      %p89 = scmp.eq.s32.totalorder %s21, 0
      %p90 = por %p88, %p89
      %s92 = sadd.s32 %s91, 1
      %p95 = scmp.eq.s32.totalorder %s15, 1
      %p96 = scmp.ne.s32.totalorder %s91, %s93
      %p97 = scmp.eq.s32.totalorder %s15, 0
      %p98 = por %p96, %p97
      %p99 = scmp.ne.s32.totalorder %s91, %s93
      %p100 = scmp.eq.s32.totalorder %s20, 1
      %p101 = por %p99, %p100
      %p102 = scmp.ne.s32.totalorder %s93, %s94
      %p103 = scmp.eq.s32.totalorder %s20, 0
      %p104 = por %p102, %p103
      %p105 = scmp.ne.s32.totalorder %s93, %s94
      %p106 = scmp.eq.s32.totalorder %s21, 1
      %p107 = por %p105, %p106
      %p109 = scmp.ne.s32.totalorder %s94, %s108
      %p110 = scmp.eq.s32.totalorder %s21, 0
      %p111 = por %p109, %p110
      %s113 = sadd.s32 %s112, 1
      %p116 = scmp.eq.s32.totalorder %s15, 1
      %p117 = scmp.ne.s32.totalorder %s112, %s114
      %p118 = scmp.eq.s32.totalorder %s15, 0
      %p119 = por %p117, %p118
      %p120 = scmp.ne.s32.totalorder %s112, %s114
      %p121 = scmp.eq.s32.totalorder %s20, 1
      %p122 = por %p120, %p121
      %p123 = scmp.ne.s32.totalorder %s114, %s115
      %p124 = scmp.eq.s32.totalorder %s20, 0
      %p125 = por %p123, %p124
      %p126 = scmp.ne.s32.totalorder %s114, %s115
      %p127 = scmp.eq.s32.totalorder %s21, 1
      %p128 = por %p126, %p127
      %p130 = scmp.ne.s32.totalorder %s115, %s129
      %p131 = scmp.eq.s32.totalorder %s21, 0
      %p132 = por %p130, %p131
      %s134 = sadd.s32 %s133, 1
      %p137 = scmp.eq.s32.totalorder %s15, 1
      %p138 = scmp.ne.s32.totalorder %s133, %s135
      %p139 = scmp.eq.s32.totalorder %s15, 0
      %p140 = por %p138, %p139
      %p141 = scmp.ne.s32.totalorder %s133, %s135
      %p142 = scmp.eq.s32.totalorder %s20, 1
      %p143 = por %p141, %p142
      %p144 = scmp.ne.s32.totalorder %s135, %s136
      %p145 = scmp.eq.s32.totalorder %s20, 0
      %p146 = por %p144, %p145
      %p147 = scmp.ne.s32.totalorder %s135, %s136
      %p148 = scmp.eq.s32.totalorder %s21, 1
      %p149 = por %p147, %p148
      %p151 = scmp.ne.s32.totalorder %s136, %s150
      %p152 = scmp.eq.s32.totalorder %s21, 0
      %p153 = por %p151, %p152
      %s155 = sadd.s32 %s154, 1
      %p158 = scmp.eq.s32.totalorder %s15, 1
      %p159 = scmp.ne.s32.totalorder %s154, %s156
      %p160 = scmp.eq.s32.totalorder %s15, 0
      %p161 = por %p159, %p160
      %p162 = scmp.ne.s32.totalorder %s154, %s156
      %p163 = scmp.eq.s32.totalorder %s20, 1
      %p164 = por %p162, %p163
      %p165 = scmp.ne.s32.totalorder %s156, %s157
      %p166 = scmp.eq.s32.totalorder %s20, 0
      %p167 = por %p165, %p166
      %p168 = scmp.ne.s32.totalorder %s156, %s157
      %p169 = scmp.eq.s32.totalorder %s21, 1
      %p170 = por %p168, %p169
      %p172 = scmp.ne.s32.totalorder %s157, %s171
      %p173 = scmp.eq.s32.totalorder %s21, 0
      %p174 = por %p172, %p173
      %s175 = ssub.s32 %s15, %s22
      %p176 = scmp.eq.s32.totalorder %s175, 0
      %s178 = sadd.s32 %s177, 1
      %s179 = scalar_select %p176, %s177, %s178
      %p182 = pneg %p176
      %p183 = scmp.eq.s32.totalorder %s15, 1
      %p184 = por %p182, %p183
      %p185 = scmp.ne.s32.totalorder %s177, %s180
      %p186 = scmp.eq.s32.totalorder %s15, 0
      %p187 = por %p185, %p186
      %p188 = scmp.ne.s32.totalorder %s177, %s180
      %p189 = scmp.eq.s32.totalorder %s20, 1
      %p190 = por %p188, %p189
      %p191 = scmp.ne.s32.totalorder %s180, %s181
      %p192 = scmp.eq.s32.totalorder %s20, 0
      %p193 = por %p191, %p192
      %p194 = scmp.ne.s32.totalorder %s180, %s181
      %p195 = scmp.eq.s32.totalorder %s21, 1
      %p196 = por %p194, %p195
      %p198 = scmp.ne.s32.totalorder %s181, %s197
      %p199 = scmp.eq.s32.totalorder %s21, 0
      %p200 = por %p198, %p199
      %p201 = scmp.le.s32.totalorder 1, %s15
      %p202 = scmp.lt.s32.totalorder %s15, 3
      %p203 = pnand %p201, %p202
      %p204 = pneg %p203
      // Predicated region
      $region9: #{tpu_custom_call.1} parent=5 // pred_check
        _
      $region10: #{tpu_custom_call.1} parent=5 // pred_check_branch
        %206 = sbr.rel (%p203) target = $region12
      $region11: #{tpu_custom_call.1} parent=5 // pred_region
        %s207 = ssub.s32 %s15, 1
        // Predicated region
        $region13: #{tpu_custom_call.1} parent=11 // pred_check
          %p208 = pneg %p62
        $region14: #{tpu_custom_call.1} parent=11 // pred_check_branch
          %210 = sbr.rel (%p208) target = $region16
        $region15: #{tpu_custom_call.1} parent=11 // pred_region
          %s212 = ssub.s32 3072, 3072
          %213 = vsyncadd [#allocation4], %s212
          %s214 = sshll.u32 [#allocation3], 4
          %s215 = int_to_ptr.vmem [resolvable:$true] %s214
          %220 = dma.hbm_to_vmem [thread:$0]  %s1, 3072, %s215, [#allocation4], 64, 64, 4
        $region16: #{tpu_custom_call.1} parent=11 // pred_fallthru
          _
        // Predicated region
        $region17: #{tpu_custom_call.1} parent=11 // pred_check
          %p221 = pneg %p83
        $region18: #{tpu_custom_call.1} parent=11 // pred_check_branch
          %223 = sbr.rel (%p221) target = $region20
        $region19: #{tpu_custom_call.1} parent=11 // pred_region
          _
        $region20: #{tpu_custom_call.1} parent=11 // pred_fallthru
          _
        // Predicated region
        $region21: #{tpu_custom_call.1} parent=11 // pred_check
          %p224 = pneg %p104
        $region22: #{tpu_custom_call.1} parent=11 // pred_check_branch
          %226 = sbr.rel (%p224) target = $region24
        $region23: #{tpu_custom_call.1} parent=11 // pred_region
          %s228 = ssub.s32 3072, 3072
          %229 = vsyncadd [#allocation6], %s228
          %s230 = sshll.u32 [#allocation5], 4
          %s231 = int_to_ptr.vmem [resolvable:$true] %s230
          %236 = dma.hbm_to_vmem [thread:$0]  %s3, 3072, %s231, [#allocation6], 64, 64, 4
        $region24: #{tpu_custom_call.1} parent=11 // pred_fallthru
          _
        // Predicated region
        $region25: #{tpu_custom_call.1} parent=11 // pred_check
          %p237 = pneg %p125
        $region26: #{tpu_custom_call.1} parent=11 // pred_check_branch
          %239 = sbr.rel (%p237) target = $region28
        $region27: #{tpu_custom_call.1} parent=11 // pred_region
          _
        $region28: #{tpu_custom_call.1} parent=11 // pred_fallthru
          _
        // Predicated region
        $region29: #{tpu_custom_call.1} parent=11 // pred_check
          %p240 = pneg %p146
        $region30: #{tpu_custom_call.1} parent=11 // pred_check_branch
          %242 = sbr.rel (%p240) target = $region32
        $region31: #{tpu_custom_call.1} parent=11 // pred_region
          %s244 = ssub.s32 3072, 3072
          %245 = vsyncadd [#allocation6], %s244
          %s246 = sshll.u32 [#allocation7], 4
          %s247 = int_to_ptr.vmem [resolvable:$true] %s246
          %252 = dma.hbm_to_vmem [thread:$0]  %s5, 3072, %s247, [#allocation6], 64, 64, 4
        $region32: #{tpu_custom_call.1} parent=11 // pred_fallthru
          _
        // Predicated region
        $region33: #{tpu_custom_call.1} parent=11 // pred_check
          %p253 = pneg %p167
        $region34: #{tpu_custom_call.1} parent=11 // pred_check_branch
          %255 = sbr.rel (%p253) target = $region36
        $region35: #{tpu_custom_call.1} parent=11 // pred_region
          _
        $region36: #{tpu_custom_call.1} parent=11 // pred_fallthru
          _
      $region12: #{tpu_custom_call.1} parent=5 // pred_fallthru
        _
      %p256 = scmp.lt.s32.totalorder %s15, 2
      // Predicated region
      $region37: #{tpu_custom_call.1} parent=5 // pred_check
        %p257 = pneg %p256
      $region38: #{tpu_custom_call.1} parent=5 // pred_check_branch
        %259 = sbr.rel (%p257) target = $region40
      $region39: #{tpu_custom_call.1} parent=5 // pred_region
        // Predicated region
        $region41: #{tpu_custom_call.1} parent=39 // pred_check
          %p260 = pneg %p35
        $region42: #{tpu_custom_call.1} parent=39 // pred_check_branch
          %262 = sbr.rel (%p260) target = $region44
        $region43: #{tpu_custom_call.1} parent=39 // pred_region
          %s263 = smul.u32 2, %s15
          %p264 = scmp.lt.s32.totalorder %s263, 3
          %s265 = scalar_select %p264, %s263, 3
          %s266 = smul.addr %s265, 8
          %s267 = scalar_lea.vmem %s0, %s266
          %s268 = smul.u32 2, %s15
        $region44: #{tpu_custom_call.1} parent=39 // pred_fallthru
          _
      $region40: #{tpu_custom_call.1} parent=5 // pred_fallthru
        _
      %p269 = scmp.le.s32.totalorder 1, %s15
      %p270 = scmp.lt.s32.totalorder %s15, 3
      %p271 = pnand %p269, %p270
      %p272 = pneg %p271
      // Predicated region
      $region45: #{tpu_custom_call.1} parent=5 // pred_check
        _
      $region46: #{tpu_custom_call.1} parent=5 // pred_check_branch
        %274 = sbr.rel (%p271) target = $region48
      $region47: #{tpu_custom_call.1} parent=5 // pred_region
        %s275 = ssub.s32 %s15, 1
        // Predicated region
        $region49: #{tpu_custom_call.1} parent=47 // pred_check
          %p276 = pneg %p62
        $region50: #{tpu_custom_call.1} parent=47 // pred_check_branch
          %278 = sbr.rel (%p276) target = $region52
        $region51: #{tpu_custom_call.1} parent=47 // pred_region
          %279 = dma.done [#allocation4], 3072
        $region52: #{tpu_custom_call.1} parent=47 // pred_fallthru
          _
        // Predicated region
        $region53: #{tpu_custom_call.1} parent=47 // pred_check
          %p280 = pneg %p104
        $region54: #{tpu_custom_call.1} parent=47 // pred_check_branch
          %282 = sbr.rel (%p280) target = $region56
        $region55: #{tpu_custom_call.1} parent=47 // pred_region
          %283 = dma.done [#allocation6], 3072
        $region56: #{tpu_custom_call.1} parent=47 // pred_fallthru
          _
        // Predicated region
        $region57: #{tpu_custom_call.1} parent=47 // pred_check
          %p284 = pneg %p146
        $region58: #{tpu_custom_call.1} parent=47 // pred_check_branch
          %286 = sbr.rel (%p284) target = $region60
        $region59: #{tpu_custom_call.1} parent=47 // pred_region
          %287 = dma.done [#allocation6], 3072
        $region60: #{tpu_custom_call.1} parent=47 // pred_fallthru
          _
        %s288 = smul.u32 2, %s20
        %p289 = scmp.lt.s32.totalorder %s288, 3
        %s290 = scalar_select %p289, %s288, 3
        %s291 = smul.addr %s290, 8
        %s292 = scalar_lea.vmem %s0, %s291
        %p293 = pneg %p41
        %p294 = pneg %p38
        %p295 = pneg %p62
        %p296 = pneg %p59
        %p297 = pneg %p83
        %p298 = pneg %p80
        %p299 = pneg %p104
        %p300 = pneg %p101
        %p301 = pneg %p125
        %p302 = pneg %p122
        %p303 = pneg %p146
        %p304 = pneg %p143
        %p305 = pneg %p167
        %p306 = pneg %p164
        %p307 = pneg %p193
        %p308 = pneg %p190
        %s309 = smul.u32 2, %s20
        %p310 = scmp.lt.s32.totalorder %s309, 3
        %s311 = scalar_select %p310, %s309, 3
        %s312 = smul.addr %s311, 8
        %s313 = scalar_lea.vmem %s7, %s312
        %s314 = smul.u32 2, %s20
        %p315 = scmp.lt.s32.totalorder %s314, 3
        %s316 = scalar_select %p315, %s314, 3
        %s317 = smul.addr %s316, 8
        %s318 = scalar_lea.vmem %s0, %s317
        %s319 = smul.u32 2, %s20
        %s320 = smul.u32 2, %s20
        %p321 = scmp.lt.s32.totalorder %s320, 3
        %s322 = scalar_select %p321, %s320, 3
        %s323 = smul.addr %s322, 8
        %s324 = scalar_lea.vmem %s7, %s323
        %s325 = smul.u32 2, %s20
        %v327 = vlaneseq
        %v328 = vshrl.u32 %v327, 7
        %v329 = vadd.s32 %v328, 8
        %vm330 = vcmp.lt.s32.totalorder %v328, 0
        %v331 = vsub.s32 0, %v328
        %v332 = vsel %vm330, %v331, %v328
        %v333 = vshrl.u32 %v332, 4
        %v334 = vand.u32 %v332, 15
        %v335 = vsub.s32 0, %v334
        %v336 = vsel %vm330, %v335, %v334
        %vm337 = vcmp.lt.s32.totalorder %v329, 0
        %v338 = vsub.s32 0, %v329
        %v339 = vsel %vm337, %v338, %v329
        %v340 = vshrl.u32 %v339, 4
        %v341 = vand.u32 %v339, 15
        %v342 = vsub.s32 0, %v341
        %v343 = vsel %vm337, %v342, %v341
        %vm344 = vcmp.ne.s32.totalorder %v336, 0
        %vm345 = vcmp.ne.s32.totalorder %v343, 0
        %vm346 = vcmp.lt.s32.totalorder %v336, 0
        %vm347 = vcmp.lt.s32.totalorder %v343, 0
        %vm348 = vmand %vm346, %vm344
        %vm349 = vmand %vm347, %vm345
        %v350 = vadd.s32 %v336, 16
        %v351 = vadd.s32 %v343, 16
        %v352 = vsel %vm348, %v350, %v336
        %v353 = vsel %vm349, %v351, %v343
        %vm354 = vcmp.ge.s32.totalorder %v352, 1
        %vm355 = vcmp.ge.s32.totalorder %v353, 1
        %vm356 = vcmp.lt.s32.totalorder %v352, 15
        %vm357 = vcmp.lt.s32.totalorder %v353, 15
        %358 = vst [vmem:[#allocation2] sm:$0xff] 0.0
        %359 = vst [vmem:[#allocation2 + $0x8] sm:$0xff] 0.0
        %v360 = vld [vmem:[%s318] sm:$0xff]
        %v361 = vld [vmem:[%s318 + $0x8] sm:$0xff]
        %vm362 = vcmask 97280
        %363 = vst.msk [vmem:[#allocation2] sm:$0xff] %vm362, %v360
        %364 = vst.msk [vmem:[#allocation2 + $0x8] sm:$0xff] %vm362, %v361
        %v365 = vld [vmem:[#allocation2] sm:$0xff]
        %v366 = vld [vmem:[#allocation2 + $0x8] sm:$0xff]
        %v367 = vrot.slane %v365, 7
        %v368 = vrot.slane %v366, 7
        %vm369 = vcmp.lt.s32.totalorder %v328, 1
        %v370 = vsel %vm369, %v367, %v368
        %v371 = vsel %vm369, %v368, %v367
        %v372 = vsel %vm354, 1, 0
        %v373 = vsel %vm355, 1, 0
        %vm374 = vcmp.eq.s32.totalorder %v372, 1
        %vm375 = vcmp.eq.s32.totalorder %v373, 1
        %v376 = vsel %vm374, %v371, 0.0
        %v377 = vsel %vm375, %v370, 0.0
        %v378 = vrot.slane %v365, 1
        %v379 = vrot.slane %v366, 1
        %vm380 = vcmp.lt.s32.totalorder %v328, 7
        %v381 = vsel %vm380, %v378, %v379
        %v382 = vsel %vm380, %v379, %v378
        %v383 = vsel %vm356, 1, 0
        %v384 = vsel %vm357, 1, 0
        %vm385 = vcmp.eq.s32.totalorder %v383, 1
        %vm386 = vcmp.eq.s32.totalorder %v384, 1
        %v387 = vsel %vm385, %v381, 0.0
        %v388 = vsel %vm386, %v382, 0.0
        %v389 = vpack.c.bf16 %v377, %v376
        %v390 = vpack.c.bf16 %v366, %v365
        %v391 = vpack.c.bf16 %v388, %v387
        %v392 = vld [vmem:[#allocation3] sm:$0xf]
        %v393 = vld [vmem:[#allocation3 + $0x4] sm:$0xf]
        %v394 = vld [vmem:[#allocation3 + $0x8] sm:$0xf]
        %v395 = vld [vmem:[#allocation3 + $0xc] sm:$0xf]
        %v396 = vld [vmem:[#allocation3 + $0x10] sm:$0xf]
        %v397 = vld [vmem:[#allocation3 + $0x14] sm:$0xf]
        %v398 = vld [vmem:[#allocation3 + $0x18] sm:$0xf]
        %v399 = vld [vmem:[#allocation3 + $0x1c] sm:$0xf]
        %v400 = vld [vmem:[#allocation3 + $0x20] sm:$0xf]
        %v401 = vld [vmem:[#allocation3 + $0x24] sm:$0xf]
        %v402 = vld [vmem:[#allocation3 + $0x28] sm:$0xf]
        %v403 = vld [vmem:[#allocation3 + $0x2c] sm:$0xf]
        %v404 = vld [vmem:[#allocation3 + $0x30] sm:$0xf]
        %v405 = vld [vmem:[#allocation3 + $0x34] sm:$0xf]
        %v406 = vld [vmem:[#allocation3 + $0x38] sm:$0xf]
        %v407 = vld [vmem:[#allocation3 + $0x3c] sm:$0xf]
        %v408 = vld [vmem:[#allocation3 + $0x40] sm:$0xf]
        %v409 = vld [vmem:[#allocation3 + $0x44] sm:$0xf]
        %v410 = vld [vmem:[#allocation3 + $0x48] sm:$0xf]
        %v411 = vld [vmem:[#allocation3 + $0x4c] sm:$0xf]
        %v412 = vld [vmem:[#allocation3 + $0x50] sm:$0xf]
        %v413 = vld [vmem:[#allocation3 + $0x54] sm:$0xf]
        %v414 = vld [vmem:[#allocation3 + $0x58] sm:$0xf]
        %v415 = vld [vmem:[#allocation3 + $0x5c] sm:$0xf]
        %v416 = vld [vmem:[#allocation3 + $0x60] sm:$0xf]
        %v417 = vld [vmem:[#allocation3 + $0x64] sm:$0xf]
        %v418 = vld [vmem:[#allocation3 + $0x68] sm:$0xf]
        %v419 = vld [vmem:[#allocation3 + $0x6c] sm:$0xf]
        %v420 = vld [vmem:[#allocation3 + $0x70] sm:$0xf]
        %v421 = vld [vmem:[#allocation3 + $0x74] sm:$0xf]
        %v422 = vld [vmem:[#allocation3 + $0x78] sm:$0xf]
        %v423 = vld [vmem:[#allocation3 + $0x7c] sm:$0xf]
        %v424 = vld [vmem:[#allocation3 + $0x80] sm:$0xf]
        %v425 = vld [vmem:[#allocation3 + $0x84] sm:$0xf]
        %v426 = vld [vmem:[#allocation3 + $0x88] sm:$0xf]
        %v427 = vld [vmem:[#allocation3 + $0x8c] sm:$0xf]
        %v428 = vld [vmem:[#allocation3 + $0x90] sm:$0xf]
        %v429 = vld [vmem:[#allocation3 + $0x94] sm:$0xf]
        %v430 = vld [vmem:[#allocation3 + $0x98] sm:$0xf]
        %v431 = vld [vmem:[#allocation3 + $0x9c] sm:$0xf]
        %v432 = vld [vmem:[#allocation3 + $0xa0] sm:$0xf]
        %v433 = vld [vmem:[#allocation3 + $0xa4] sm:$0xf]
        %v434 = vld [vmem:[#allocation3 + $0xa8] sm:$0xf]
        %v435 = vld [vmem:[#allocation3 + $0xac] sm:$0xf]
        %v436 = vld [vmem:[#allocation3 + $0xb0] sm:$0xf]
        %v437 = vld [vmem:[#allocation3 + $0xb4] sm:$0xf]
        %v438 = vld [vmem:[#allocation3 + $0xb8] sm:$0xf]
        %v439 = vld [vmem:[#allocation3 + $0xbc] sm:$0xf]
        %v440 = vld [vmem:[%s2] sm:$0x1]
        %v442 = vlaneseq
        %v443 = vshrl.u32 %v442, 7
        %v444 = vsub.s32 0, %v443
        %v445 = vrot.slane %v440, %v444
        %v495 = vunpack.c.l.b16 %v392
        %v496 = vunpack.c.l.b16 %v393
        %v497 = vunpack.c.l.b16 %v394
        %v498 = vunpack.c.l.b16 %v395
        %v499 = vunpack.c.l.b16 %v396
        %v500 = vunpack.c.l.b16 %v397
        %v501 = vunpack.c.l.b16 %v398
        %v502 = vunpack.c.l.b16 %v399
        %v503 = vunpack.c.l.b16 %v400
        %v504 = vunpack.c.l.b16 %v401
        %v505 = vunpack.c.l.b16 %v402
        %v506 = vunpack.c.l.b16 %v403
        %v507 = vunpack.c.l.b16 %v404
        %v508 = vunpack.c.l.b16 %v405
        %v509 = vunpack.c.l.b16 %v406
        %v510 = vunpack.c.l.b16 %v407
        %v511 = vunpack.c.l.b16 %v408
        %v512 = vunpack.c.l.b16 %v409
        %v513 = vunpack.c.l.b16 %v410
        %v514 = vunpack.c.l.b16 %v411
        %v515 = vunpack.c.l.b16 %v412
        %v516 = vunpack.c.l.b16 %v413
        %v517 = vunpack.c.l.b16 %v414
        %v518 = vunpack.c.l.b16 %v415
        %v519 = vunpack.c.l.b16 %v416
        %v520 = vunpack.c.l.b16 %v417
        %v521 = vunpack.c.l.b16 %v418
        %v522 = vunpack.c.l.b16 %v419
        %v523 = vunpack.c.l.b16 %v420
        %v524 = vunpack.c.l.b16 %v421
        %v525 = vunpack.c.l.b16 %v422
        %v526 = vunpack.c.l.b16 %v423
        %v527 = vunpack.c.l.b16 %v424
        %v528 = vunpack.c.l.b16 %v425
        %v529 = vunpack.c.l.b16 %v426
        %v530 = vunpack.c.l.b16 %v427
        %v531 = vunpack.c.l.b16 %v428
        %v532 = vunpack.c.l.b16 %v429
        %v533 = vunpack.c.l.b16 %v430
        %v534 = vunpack.c.l.b16 %v431
        %v535 = vunpack.c.l.b16 %v432
        %v536 = vunpack.c.l.b16 %v433
        %v537 = vunpack.c.l.b16 %v434
        %v538 = vunpack.c.l.b16 %v435
        %v539 = vunpack.c.l.b16 %v436
        %v540 = vunpack.c.l.b16 %v437
        %v541 = vunpack.c.l.b16 %v438
        %v542 = vunpack.c.l.b16 %v439
        %v543 = vpack.c.b16 %v496, %v495
        %v544 = vpack.c.b16 %v498, %v497
        %v545 = vpack.c.b16 %v500, %v499
        %v546 = vpack.c.b16 %v502, %v501
        %v547 = vpack.c.b16 %v504, %v503
        %v548 = vpack.c.b16 %v506, %v505
        %v549 = vpack.c.b16 %v508, %v507
        %v550 = vpack.c.b16 %v510, %v509
        %v551 = vpack.c.b16 %v512, %v511
        %v552 = vpack.c.b16 %v514, %v513
        %v553 = vpack.c.b16 %v516, %v515
        %v554 = vpack.c.b16 %v518, %v517
        %v555 = vpack.c.b16 %v520, %v519
        %v556 = vpack.c.b16 %v522, %v521
        %v557 = vpack.c.b16 %v524, %v523
        %v558 = vpack.c.b16 %v526, %v525
        %v559 = vpack.c.b16 %v528, %v527
        %v560 = vpack.c.b16 %v530, %v529
        %v561 = vpack.c.b16 %v532, %v531
        %v562 = vpack.c.b16 %v534, %v533
        %v563 = vpack.c.b16 %v536, %v535
        %v564 = vpack.c.b16 %v538, %v537
        %v565 = vpack.c.b16 %v540, %v539
        %v566 = vpack.c.b16 %v542, %v541
        %591 = vmatprep.subr.bf16.mxu0 0
        %592 = vmatpush1.bf16.msra.mxu0 %v543
        %593 = vmatprep.subr.bf16.mxu0 0
        %594 = vmatpush1.bf16.msra.mxu0 %v544
        %595 = vmatprep.subr.bf16.mxu0 0
        %596 = vmatpush1.bf16.msra.mxu0 %v545
        %597 = vmatprep.subr.bf16.mxu0 0
        %598 = vmatpush1.bf16.msra.mxu0 %v546
        %599 = vmatprep.subr.bf16.mxu0 0
        %600 = vmatpush1.bf16.msra.mxu0 %v547
        %601 = vmatprep.subr.bf16.mxu0 0
        %602 = vmatpush1.bf16.msra.mxu0 %v548
        %603 = vmatprep.subr.bf16.mxu0 0
        %604 = vmatpush1.bf16.msra.mxu0 %v549
        %605 = vmatprep.subr.bf16.mxu0 0
        %606 = vmatpush1.bf16.msra.mxu0 %v550
        %607 = vmatprep.subr.bf16.mxu0 0
        %608 = vmatpush1.bf16.msra.mxu0 %v551
        %609 = vmatprep.subr.bf16.mxu0 0
        %610 = vmatpush1.bf16.msra.mxu0 %v552
        %611 = vmatprep.subr.bf16.mxu0 0
        %612 = vmatpush1.bf16.msra.mxu0 %v553
        %613 = vmatprep.subr.bf16.mxu0 0
        %614 = vmatpush1.bf16.msra.mxu0 %v554
        %615 = vmatprep.subr.bf16.mxu0 0
        %616 = vmatpush1.bf16.msra.mxu0 %v555
        %617 = vmatprep.subr.bf16.mxu0 0
        %618 = vmatpush1.bf16.msra.mxu0 %v556
        %619 = vmatprep.subr.bf16.mxu0 0
        %620 = vmatpush1.bf16.msra.mxu0 %v557
        %621 = vmatprep.subr.bf16.mxu0 0
        %622 = vmatpush1.bf16.msra.mxu0 %v558
        %623 = vmatprep.mubr.bf16.mxu0 %v390
        %624 = vmatmul.mubr.bf16.gmra.mrb[0].mxu0 %v389
        %v625 = vpop.f32.mrb[0].mxu0
        %v626 = vadd.f32 %v445, %v625
        %v627 = vpop.f32.mrb[0].mxu0
        %v628 = vpop.f32.mrb[0].mxu0
        %v629 = vadd.f32 %v445, %v628
        %v630 = vpop.f32.mrb[0].mxu0
        %631 = vdwg.mxu0
        %632 = vmatprep.subr.bf16.mxu0 0
        %633 = vmatpush1.bf16.msra.mxu0 %v559
        %634 = vmatprep.subr.bf16.mxu0 0
        %635 = vmatpush1.bf16.msra.mxu0 %v560
        %636 = vmatprep.subr.bf16.mxu0 0
        %637 = vmatpush1.bf16.msra.mxu0 %v561
        %638 = vmatprep.subr.bf16.mxu0 0
        %639 = vmatpush1.bf16.msra.mxu0 %v562
        %640 = vmatprep.subr.bf16.mxu0 0
        %641 = vmatpush1.bf16.msra.mxu0 %v563
        %642 = vmatprep.subr.bf16.mxu0 0
        %643 = vmatpush1.bf16.msra.mxu0 %v564
        %644 = vmatprep.subr.bf16.mxu0 0
        %645 = vmatpush1.bf16.msra.mxu0 %v565
        %646 = vmatprep.subr.bf16.mxu0 0
        %647 = vmatpush1.bf16.msra.mxu0 %v566
        %648 = vmatprep.subr.bf16.mxu0 0
        %649 = vmatpush1.bf16.msra.mxu0 0
        %650 = vmatprep.subr.bf16.mxu0 0
        %651 = vmatpush1.bf16.msra.mxu0 0
        %652 = vmatprep.subr.bf16.mxu0 0
        %653 = vmatpush1.bf16.msra.mxu0 0
        %654 = vmatprep.subr.bf16.mxu0 0
        %655 = vmatpush1.bf16.msra.mxu0 0
        %656 = vmatprep.subr.bf16.mxu0 0
        %657 = vmatpush1.bf16.msra.mxu0 0
        %658 = vmatprep.subr.bf16.mxu0 0
        %659 = vmatpush1.bf16.msra.mxu0 0
        %660 = vmatprep.subr.bf16.mxu0 0
        %661 = vmatpush1.bf16.msra.mxu0 0
        %662 = vmatprep.subr.bf16.mxu0 0
        %663 = vmatpush1.bf16.msra.mxu0 0
        %664 = vmatprep.mubr.bf16.mxu0 0
        %665 = vmatmul.mubr.bf16.gmra.mrb[0].mxu0 %v391
        %v666 = vpop.f32.mrb[0].mxu0
        %v667 = vadd.f32 %v626, %v666
        %v668 = vpop.f32.mrb[0].mxu0
        %v669 = vpop.f32.mrb[0].mxu0
        %v670 = vadd.f32 %v629, %v669
        %v671 = vpop.f32.mrb[0].mxu0
        %672 = vdwg.mxu0
        %v673 = vmul.f32 %v667, %v667
        %v674 = vmul.f32 %v670, %v670
        %v675 = vmul.f32 %v667, %v673
        %v676 = vmul.f32 %v670, %v674
        %v677 = vmul.f32 %v675, 0.044715
        %v678 = vmul.f32 %v676, 0.044715
        %v679 = vadd.f32 %v667, %v677
        %v680 = vadd.f32 %v670, %v678
        %v681 = vmul.f32 %v679, 0.7978846
        %v682 = vmul.f32 %v680, 0.7978846
        %v683 = vtanh.pop %v681
        %v684 = vtanh.pop %v682
        %v685 = vadd.f32 %v683, 1.0
        %v686 = vadd.f32 %v684, 1.0
        %v687 = vmul.f32 %v685, 0.5
        %v688 = vmul.f32 %v686, 0.5
        %v689 = vmul.f32 %v667, %v687
        %v690 = vmul.f32 %v670, %v688
        %v691 = vrot.slane %v689, 7
        %v692 = vrot.slane %v690, 7
        %v693 = vsel %vm369, %v691, %v692
        %v694 = vsel %vm369, %v692, %v691
        %v695 = vsel %vm374, %v694, 0.0
        %v696 = vsel %vm375, %v693, 0.0
        %v697 = vrot.slane %v689, 1
        %v698 = vrot.slane %v690, 1
        %v699 = vsel %vm380, %v697, %v698
        %v700 = vsel %vm380, %v698, %v697
        %v701 = vsel %vm385, %v699, 0.0
        %v702 = vsel %vm386, %v700, 0.0
        %v703 = vpack.c.bf16 %v696, %v695
        %v704 = vpack.c.bf16 %v690, %v689
        %v705 = vpack.c.bf16 %v702, %v701
        %v706 = vld [vmem:[#allocation5] sm:$0xf]
        %v707 = vld [vmem:[#allocation5 + $0x4] sm:$0xf]
        %v708 = vld [vmem:[#allocation5 + $0x8] sm:$0xf]
        %v709 = vld [vmem:[#allocation5 + $0xc] sm:$0xf]
        %v710 = vld [vmem:[#allocation5 + $0x10] sm:$0xf]
        %v711 = vld [vmem:[#allocation5 + $0x14] sm:$0xf]
        %v712 = vld [vmem:[#allocation5 + $0x18] sm:$0xf]
        %v713 = vld [vmem:[#allocation5 + $0x1c] sm:$0xf]
        %v714 = vld [vmem:[#allocation5 + $0x20] sm:$0xf]
        %v715 = vld [vmem:[#allocation5 + $0x24] sm:$0xf]
        %v716 = vld [vmem:[#allocation5 + $0x28] sm:$0xf]
        %v717 = vld [vmem:[#allocation5 + $0x2c] sm:$0xf]
        %v718 = vld [vmem:[#allocation5 + $0x30] sm:$0xf]
        %v719 = vld [vmem:[#allocation5 + $0x34] sm:$0xf]
        %v720 = vld [vmem:[#allocation5 + $0x38] sm:$0xf]
        %v721 = vld [vmem:[#allocation5 + $0x3c] sm:$0xf]
        %v722 = vld [vmem:[#allocation5 + $0x40] sm:$0xf]
        %v723 = vld [vmem:[#allocation5 + $0x44] sm:$0xf]
        %v724 = vld [vmem:[#allocation5 + $0x48] sm:$0xf]
        %v725 = vld [vmem:[#allocation5 + $0x4c] sm:$0xf]
        %v726 = vld [vmem:[#allocation5 + $0x50] sm:$0xf]
        %v727 = vld [vmem:[#allocation5 + $0x54] sm:$0xf]
        %v728 = vld [vmem:[#allocation5 + $0x58] sm:$0xf]
        %v729 = vld [vmem:[#allocation5 + $0x5c] sm:$0xf]
        %v730 = vld [vmem:[#allocation5 + $0x60] sm:$0xf]
        %v731 = vld [vmem:[#allocation5 + $0x64] sm:$0xf]
        %v732 = vld [vmem:[#allocation5 + $0x68] sm:$0xf]
        %v733 = vld [vmem:[#allocation5 + $0x6c] sm:$0xf]
        %v734 = vld [vmem:[#allocation5 + $0x70] sm:$0xf]
        %v735 = vld [vmem:[#allocation5 + $0x74] sm:$0xf]
        %v736 = vld [vmem:[#allocation5 + $0x78] sm:$0xf]
        %v737 = vld [vmem:[#allocation5 + $0x7c] sm:$0xf]
        %v738 = vld [vmem:[#allocation5 + $0x80] sm:$0xf]
        %v739 = vld [vmem:[#allocation5 + $0x84] sm:$0xf]
        %v740 = vld [vmem:[#allocation5 + $0x88] sm:$0xf]
        %v741 = vld [vmem:[#allocation5 + $0x8c] sm:$0xf]
        %v742 = vld [vmem:[#allocation5 + $0x90] sm:$0xf]
        %v743 = vld [vmem:[#allocation5 + $0x94] sm:$0xf]
        %v744 = vld [vmem:[#allocation5 + $0x98] sm:$0xf]
        %v745 = vld [vmem:[#allocation5 + $0x9c] sm:$0xf]
        %v746 = vld [vmem:[#allocation5 + $0xa0] sm:$0xf]
        %v747 = vld [vmem:[#allocation5 + $0xa4] sm:$0xf]
        %v748 = vld [vmem:[#allocation5 + $0xa8] sm:$0xf]
        %v749 = vld [vmem:[#allocation5 + $0xac] sm:$0xf]
        %v750 = vld [vmem:[#allocation5 + $0xb0] sm:$0xf]
        %v751 = vld [vmem:[#allocation5 + $0xb4] sm:$0xf]
        %v752 = vld [vmem:[#allocation5 + $0xb8] sm:$0xf]
        %v753 = vld [vmem:[#allocation5 + $0xbc] sm:$0xf]
        %v754 = vld [vmem:[%s4] sm:$0x1]
        %v756 = vlaneseq
        %v757 = vshrl.u32 %v756, 7
        %v758 = vsub.s32 0, %v757
        %v759 = vrot.slane %v754, %v758
        %v809 = vunpack.c.l.b16 %v706
        %v810 = vunpack.c.l.b16 %v707
        %v811 = vunpack.c.l.b16 %v708
        %v812 = vunpack.c.l.b16 %v709
        %v813 = vunpack.c.l.b16 %v710
        %v814 = vunpack.c.l.b16 %v711
        %v815 = vunpack.c.l.b16 %v712
        %v816 = vunpack.c.l.b16 %v713
        %v817 = vunpack.c.l.b16 %v714
        %v818 = vunpack.c.l.b16 %v715
        %v819 = vunpack.c.l.b16 %v716
        %v820 = vunpack.c.l.b16 %v717
        %v821 = vunpack.c.l.b16 %v718
        %v822 = vunpack.c.l.b16 %v719
        %v823 = vunpack.c.l.b16 %v720
        %v824 = vunpack.c.l.b16 %v721
        %v825 = vunpack.c.l.b16 %v722
        %v826 = vunpack.c.l.b16 %v723
        %v827 = vunpack.c.l.b16 %v724
        %v828 = vunpack.c.l.b16 %v725
        %v829 = vunpack.c.l.b16 %v726
        %v830 = vunpack.c.l.b16 %v727
        %v831 = vunpack.c.l.b16 %v728
        %v832 = vunpack.c.l.b16 %v729
        %v833 = vunpack.c.l.b16 %v730
        %v834 = vunpack.c.l.b16 %v731
        %v835 = vunpack.c.l.b16 %v732
        %v836 = vunpack.c.l.b16 %v733
        %v837 = vunpack.c.l.b16 %v734
        %v838 = vunpack.c.l.b16 %v735
        %v839 = vunpack.c.l.b16 %v736
        %v840 = vunpack.c.l.b16 %v737
        %v841 = vunpack.c.l.b16 %v738
        %v842 = vunpack.c.l.b16 %v739
        %v843 = vunpack.c.l.b16 %v740
        %v844 = vunpack.c.l.b16 %v741
        %v845 = vunpack.c.l.b16 %v742
        %v846 = vunpack.c.l.b16 %v743
        %v847 = vunpack.c.l.b16 %v744
        %v848 = vunpack.c.l.b16 %v745
        %v849 = vunpack.c.l.b16 %v746
        %v850 = vunpack.c.l.b16 %v747
        %v851 = vunpack.c.l.b16 %v748
        %v852 = vunpack.c.l.b16 %v749
        %v853 = vunpack.c.l.b16 %v750
        %v854 = vunpack.c.l.b16 %v751
        %v855 = vunpack.c.l.b16 %v752
        %v856 = vunpack.c.l.b16 %v753
        %v857 = vpack.c.b16 %v810, %v809
        %v858 = vpack.c.b16 %v812, %v811
        %v859 = vpack.c.b16 %v814, %v813
        %v860 = vpack.c.b16 %v816, %v815
        %v861 = vpack.c.b16 %v818, %v817
        %v862 = vpack.c.b16 %v820, %v819
        %v863 = vpack.c.b16 %v822, %v821
        %v864 = vpack.c.b16 %v824, %v823
        %v865 = vpack.c.b16 %v826, %v825
        %v866 = vpack.c.b16 %v828, %v827
        %v867 = vpack.c.b16 %v830, %v829
        %v868 = vpack.c.b16 %v832, %v831
        %v869 = vpack.c.b16 %v834, %v833
        %v870 = vpack.c.b16 %v836, %v835
        %v871 = vpack.c.b16 %v838, %v837
        %v872 = vpack.c.b16 %v840, %v839
        %v873 = vpack.c.b16 %v842, %v841
        %v874 = vpack.c.b16 %v844, %v843
        %v875 = vpack.c.b16 %v846, %v845
        %v876 = vpack.c.b16 %v848, %v847
        %v877 = vpack.c.b16 %v850, %v849
        %v878 = vpack.c.b16 %v852, %v851
        %v879 = vpack.c.b16 %v854, %v853
        %v880 = vpack.c.b16 %v856, %v855
        %905 = vmatprep.subr.bf16.mxu0 0
        %906 = vmatpush1.bf16.msra.mxu0 %v857
        %907 = vmatprep.subr.bf16.mxu0 0
        %908 = vmatpush1.bf16.msra.mxu0 %v858
        %909 = vmatprep.subr.bf16.mxu0 0
        %910 = vmatpush1.bf16.msra.mxu0 %v859
        %911 = vmatprep.subr.bf16.mxu0 0
        %912 = vmatpush1.bf16.msra.mxu0 %v860
        %913 = vmatprep.subr.bf16.mxu0 0
        %914 = vmatpush1.bf16.msra.mxu0 %v861
        %915 = vmatprep.subr.bf16.mxu0 0
        %916 = vmatpush1.bf16.msra.mxu0 %v862
        %917 = vmatprep.subr.bf16.mxu0 0
        %918 = vmatpush1.bf16.msra.mxu0 %v863
        %919 = vmatprep.subr.bf16.mxu0 0
        %920 = vmatpush1.bf16.msra.mxu0 %v864
        %921 = vmatprep.subr.bf16.mxu0 0
        %922 = vmatpush1.bf16.msra.mxu0 %v865
        %923 = vmatprep.subr.bf16.mxu0 0
        %924 = vmatpush1.bf16.msra.mxu0 %v866
        %925 = vmatprep.subr.bf16.mxu0 0
        %926 = vmatpush1.bf16.msra.mxu0 %v867
        %927 = vmatprep.subr.bf16.mxu0 0
        %928 = vmatpush1.bf16.msra.mxu0 %v868
        %929 = vmatprep.subr.bf16.mxu0 0
        %930 = vmatpush1.bf16.msra.mxu0 %v869
        %931 = vmatprep.subr.bf16.mxu0 0
        %932 = vmatpush1.bf16.msra.mxu0 %v870
        %933 = vmatprep.subr.bf16.mxu0 0
        %934 = vmatpush1.bf16.msra.mxu0 %v871
        %935 = vmatprep.subr.bf16.mxu0 0
        %936 = vmatpush1.bf16.msra.mxu0 %v872
        %937 = vmatprep.mubr.bf16.mxu0 %v704
        %938 = vmatmul.mubr.bf16.gmra.mrb[0].mxu0 %v703
        %v939 = vpop.f32.mrb[0].mxu0
        %v940 = vadd.f32 %v759, %v939
        %v941 = vpop.f32.mrb[0].mxu0
        %v942 = vpop.f32.mrb[0].mxu0
        %v943 = vadd.f32 %v759, %v942
        %v944 = vpop.f32.mrb[0].mxu0
        %945 = vdwg.mxu0
        %946 = vmatprep.subr.bf16.mxu0 0
        %947 = vmatpush1.bf16.msra.mxu0 %v873
        %948 = vmatprep.subr.bf16.mxu0 0
        %949 = vmatpush1.bf16.msra.mxu0 %v874
        %950 = vmatprep.subr.bf16.mxu0 0
        %951 = vmatpush1.bf16.msra.mxu0 %v875
        %952 = vmatprep.subr.bf16.mxu0 0
        %953 = vmatpush1.bf16.msra.mxu0 %v876
        %954 = vmatprep.subr.bf16.mxu0 0
        %955 = vmatpush1.bf16.msra.mxu0 %v877
        %956 = vmatprep.subr.bf16.mxu0 0
        %957 = vmatpush1.bf16.msra.mxu0 %v878
        %958 = vmatprep.subr.bf16.mxu0 0
        %959 = vmatpush1.bf16.msra.mxu0 %v879
        %960 = vmatprep.subr.bf16.mxu0 0
        %961 = vmatpush1.bf16.msra.mxu0 %v880
        %962 = vmatprep.subr.bf16.mxu0 0
        %963 = vmatpush1.bf16.msra.mxu0 0
        %964 = vmatprep.subr.bf16.mxu0 0
        %965 = vmatpush1.bf16.msra.mxu0 0
        %966 = vmatprep.subr.bf16.mxu0 0
        %967 = vmatpush1.bf16.msra.mxu0 0
        %968 = vmatprep.subr.bf16.mxu0 0
        %969 = vmatpush1.bf16.msra.mxu0 0
        %970 = vmatprep.subr.bf16.mxu0 0
        %971 = vmatpush1.bf16.msra.mxu0 0
        %972 = vmatprep.subr.bf16.mxu0 0
        %973 = vmatpush1.bf16.msra.mxu0 0
        %974 = vmatprep.subr.bf16.mxu0 0
        %975 = vmatpush1.bf16.msra.mxu0 0
        %976 = vmatprep.subr.bf16.mxu0 0
        %977 = vmatpush1.bf16.msra.mxu0 0
        %978 = vmatprep.mubr.bf16.mxu0 0
        %979 = vmatmul.mubr.bf16.gmra.mrb[0].mxu0 %v705
        %v980 = vpop.f32.mrb[0].mxu0
        %v981 = vadd.f32 %v940, %v980
        %v982 = vpop.f32.mrb[0].mxu0
        %v983 = vpop.f32.mrb[0].mxu0
        %v984 = vadd.f32 %v943, %v983
        %v985 = vpop.f32.mrb[0].mxu0
        %986 = vdwg.mxu0
        %v987 = vmul.f32 %v981, %v981
        %v988 = vmul.f32 %v984, %v984
        %v989 = vmul.f32 %v981, %v987
        %v990 = vmul.f32 %v984, %v988
        %v991 = vmul.f32 %v989, 0.044715
        %v992 = vmul.f32 %v990, 0.044715
        %v993 = vadd.f32 %v981, %v991
        %v994 = vadd.f32 %v984, %v992
        %v995 = vmul.f32 %v993, 0.7978846
        %v996 = vmul.f32 %v994, 0.7978846
        %v997 = vtanh.pop %v995
        %v998 = vtanh.pop %v996
        %v999 = vadd.f32 %v997, 1.0
        %v1000 = vadd.f32 %v998, 1.0
        %v1001 = vmul.f32 %v999, 0.5
        %v1002 = vmul.f32 %v1000, 0.5
        %v1003 = vmul.f32 %v981, %v1001
        %v1004 = vmul.f32 %v984, %v1002
        %v1005 = vrot.slane %v1003, 7
        %v1006 = vrot.slane %v1004, 7
        %v1007 = vsel %vm369, %v1005, %v1006
        %v1008 = vsel %vm369, %v1006, %v1005
        %v1009 = vsel %vm374, %v1008, 0.0
        %v1010 = vsel %vm375, %v1007, 0.0
        %v1011 = vrot.slane %v1003, 1
        %v1012 = vrot.slane %v1004, 1
        %v1013 = vsel %vm380, %v1011, %v1012
        %v1014 = vsel %vm380, %v1012, %v1011
        %v1015 = vsel %vm385, %v1013, 0.0
        %v1016 = vsel %vm386, %v1014, 0.0
        %v1017 = vpack.c.bf16 %v1010, %v1009
        %v1018 = vpack.c.bf16 %v1004, %v1003
        %v1019 = vpack.c.bf16 %v1016, %v1015
        %v1020 = vld [vmem:[#allocation7] sm:$0xf]
        %v1021 = vld [vmem:[#allocation7 + $0x4] sm:$0xf]
        %v1022 = vld [vmem:[#allocation7 + $0x8] sm:$0xf]
        %v1023 = vld [vmem:[#allocation7 + $0xc] sm:$0xf]
        %v1024 = vld [vmem:[#allocation7 + $0x10] sm:$0xf]
        %v1025 = vld [vmem:[#allocation7 + $0x14] sm:$0xf]
        %v1026 = vld [vmem:[#allocation7 + $0x18] sm:$0xf]
        %v1027 = vld [vmem:[#allocation7 + $0x1c] sm:$0xf]
        %v1028 = vld [vmem:[#allocation7 + $0x20] sm:$0xf]
        %v1029 = vld [vmem:[#allocation7 + $0x24] sm:$0xf]
        %v1030 = vld [vmem:[#allocation7 + $0x28] sm:$0xf]
        %v1031 = vld [vmem:[#allocation7 + $0x2c] sm:$0xf]
        %v1032 = vld [vmem:[#allocation7 + $0x30] sm:$0xf]
        %v1033 = vld [vmem:[#allocation7 + $0x34] sm:$0xf]
        %v1034 = vld [vmem:[#allocation7 + $0x38] sm:$0xf]
        %v1035 = vld [vmem:[#allocation7 + $0x3c] sm:$0xf]
        %v1036 = vld [vmem:[#allocation7 + $0x40] sm:$0xf]
        %v1037 = vld [vmem:[#allocation7 + $0x44] sm:$0xf]
        %v1038 = vld [vmem:[#allocation7 + $0x48] sm:$0xf]
        %v1039 = vld [vmem:[#allocation7 + $0x4c] sm:$0xf]
        %v1040 = vld [vmem:[#allocation7 + $0x50] sm:$0xf]
        %v1041 = vld [vmem:[#allocation7 + $0x54] sm:$0xf]
        %v1042 = vld [vmem:[#allocation7 + $0x58] sm:$0xf]
        %v1043 = vld [vmem:[#allocation7 + $0x5c] sm:$0xf]
        %v1044 = vld [vmem:[#allocation7 + $0x60] sm:$0xf]
        %v1045 = vld [vmem:[#allocation7 + $0x64] sm:$0xf]
        %v1046 = vld [vmem:[#allocation7 + $0x68] sm:$0xf]
        %v1047 = vld [vmem:[#allocation7 + $0x6c] sm:$0xf]
        %v1048 = vld [vmem:[#allocation7 + $0x70] sm:$0xf]
        %v1049 = vld [vmem:[#allocation7 + $0x74] sm:$0xf]
        %v1050 = vld [vmem:[#allocation7 + $0x78] sm:$0xf]
        %v1051 = vld [vmem:[#allocation7 + $0x7c] sm:$0xf]
        %v1052 = vld [vmem:[#allocation7 + $0x80] sm:$0xf]
        %v1053 = vld [vmem:[#allocation7 + $0x84] sm:$0xf]
        %v1054 = vld [vmem:[#allocation7 + $0x88] sm:$0xf]
        %v1055 = vld [vmem:[#allocation7 + $0x8c] sm:$0xf]
        %v1056 = vld [vmem:[#allocation7 + $0x90] sm:$0xf]
        %v1057 = vld [vmem:[#allocation7 + $0x94] sm:$0xf]
        %v1058 = vld [vmem:[#allocation7 + $0x98] sm:$0xf]
        %v1059 = vld [vmem:[#allocation7 + $0x9c] sm:$0xf]
        %v1060 = vld [vmem:[#allocation7 + $0xa0] sm:$0xf]
        %v1061 = vld [vmem:[#allocation7 + $0xa4] sm:$0xf]
        %v1062 = vld [vmem:[#allocation7 + $0xa8] sm:$0xf]
        %v1063 = vld [vmem:[#allocation7 + $0xac] sm:$0xf]
        %v1064 = vld [vmem:[#allocation7 + $0xb0] sm:$0xf]
        %v1065 = vld [vmem:[#allocation7 + $0xb4] sm:$0xf]
        %v1066 = vld [vmem:[#allocation7 + $0xb8] sm:$0xf]
        %v1067 = vld [vmem:[#allocation7 + $0xbc] sm:$0xf]
        %v1068 = vld [vmem:[%s6] sm:$0x1]
        %v1070 = vlaneseq
        %v1071 = vshrl.u32 %v1070, 7
        %v1072 = vsub.s32 0, %v1071
        %v1073 = vrot.slane %v1068, %v1072
        %v1123 = vunpack.c.l.b16 %v1020
        %v1124 = vunpack.c.l.b16 %v1021
        %v1125 = vunpack.c.l.b16 %v1022
        %v1126 = vunpack.c.l.b16 %v1023
        %v1127 = vunpack.c.l.b16 %v1024
        %v1128 = vunpack.c.l.b16 %v1025
        %v1129 = vunpack.c.l.b16 %v1026
        %v1130 = vunpack.c.l.b16 %v1027
        %v1131 = vunpack.c.l.b16 %v1028
        %v1132 = vunpack.c.l.b16 %v1029
        %v1133 = vunpack.c.l.b16 %v1030
        %v1134 = vunpack.c.l.b16 %v1031
        %v1135 = vunpack.c.l.b16 %v1032
        %v1136 = vunpack.c.l.b16 %v1033
        %v1137 = vunpack.c.l.b16 %v1034
        %v1138 = vunpack.c.l.b16 %v1035
        %v1139 = vunpack.c.l.b16 %v1036
        %v1140 = vunpack.c.l.b16 %v1037
        %v1141 = vunpack.c.l.b16 %v1038
        %v1142 = vunpack.c.l.b16 %v1039
        %v1143 = vunpack.c.l.b16 %v1040
        %v1144 = vunpack.c.l.b16 %v1041
        %v1145 = vunpack.c.l.b16 %v1042
        %v1146 = vunpack.c.l.b16 %v1043
        %v1147 = vunpack.c.l.b16 %v1044
        %v1148 = vunpack.c.l.b16 %v1045
        %v1149 = vunpack.c.l.b16 %v1046
        %v1150 = vunpack.c.l.b16 %v1047
        %v1151 = vunpack.c.l.b16 %v1048
        %v1152 = vunpack.c.l.b16 %v1049
        %v1153 = vunpack.c.l.b16 %v1050
        %v1154 = vunpack.c.l.b16 %v1051
        %v1155 = vunpack.c.l.b16 %v1052
        %v1156 = vunpack.c.l.b16 %v1053
        %v1157 = vunpack.c.l.b16 %v1054
        %v1158 = vunpack.c.l.b16 %v1055
        %v1159 = vunpack.c.l.b16 %v1056
        %v1160 = vunpack.c.l.b16 %v1057
        %v1161 = vunpack.c.l.b16 %v1058
        %v1162 = vunpack.c.l.b16 %v1059
        %v1163 = vunpack.c.l.b16 %v1060
        %v1164 = vunpack.c.l.b16 %v1061
        %v1165 = vunpack.c.l.b16 %v1062
        %v1166 = vunpack.c.l.b16 %v1063
        %v1167 = vunpack.c.l.b16 %v1064
        %v1168 = vunpack.c.l.b16 %v1065
        %v1169 = vunpack.c.l.b16 %v1066
        %v1170 = vunpack.c.l.b16 %v1067
        %v1171 = vpack.c.b16 %v1124, %v1123
        %v1172 = vpack.c.b16 %v1126, %v1125
        %v1173 = vpack.c.b16 %v1128, %v1127
        %v1174 = vpack.c.b16 %v1130, %v1129
        %v1175 = vpack.c.b16 %v1132, %v1131
        %v1176 = vpack.c.b16 %v1134, %v1133
        %v1177 = vpack.c.b16 %v1136, %v1135
        %v1178 = vpack.c.b16 %v1138, %v1137
        %v1179 = vpack.c.b16 %v1140, %v1139
        %v1180 = vpack.c.b16 %v1142, %v1141
        %v1181 = vpack.c.b16 %v1144, %v1143
        %v1182 = vpack.c.b16 %v1146, %v1145
        %v1183 = vpack.c.b16 %v1148, %v1147
        %v1184 = vpack.c.b16 %v1150, %v1149
        %v1185 = vpack.c.b16 %v1152, %v1151
        %v1186 = vpack.c.b16 %v1154, %v1153
        %v1187 = vpack.c.b16 %v1156, %v1155
        %v1188 = vpack.c.b16 %v1158, %v1157
        %v1189 = vpack.c.b16 %v1160, %v1159
        %v1190 = vpack.c.b16 %v1162, %v1161
        %v1191 = vpack.c.b16 %v1164, %v1163
        %v1192 = vpack.c.b16 %v1166, %v1165
        %v1193 = vpack.c.b16 %v1168, %v1167
        %v1194 = vpack.c.b16 %v1170, %v1169
        %1219 = vmatprep.subr.bf16.mxu0 0
        %1220 = vmatpush1.bf16.msra.mxu0 %v1171
        %1221 = vmatprep.subr.bf16.mxu0 0
        %1222 = vmatpush1.bf16.msra.mxu0 %v1172
        %1223 = vmatprep.subr.bf16.mxu0 0
        %1224 = vmatpush1.bf16.msra.mxu0 %v1173
        %1225 = vmatprep.subr.bf16.mxu0 0
        %1226 = vmatpush1.bf16.msra.mxu0 %v1174
        %1227 = vmatprep.subr.bf16.mxu0 0
        %1228 = vmatpush1.bf16.msra.mxu0 %v1175
        %1229 = vmatprep.subr.bf16.mxu0 0
        %1230 = vmatpush1.bf16.msra.mxu0 %v1176
        %1231 = vmatprep.subr.bf16.mxu0 0
        %1232 = vmatpush1.bf16.msra.mxu0 %v1177
        %1233 = vmatprep.subr.bf16.mxu0 0
        %1234 = vmatpush1.bf16.msra.mxu0 %v1178
        %1235 = vmatprep.subr.bf16.mxu0 0
        %1236 = vmatpush1.bf16.msra.mxu0 %v1179
        %1237 = vmatprep.subr.bf16.mxu0 0
        %1238 = vmatpush1.bf16.msra.mxu0 %v1180
        %1239 = vmatprep.subr.bf16.mxu0 0
        %1240 = vmatpush1.bf16.msra.mxu0 %v1181
        %1241 = vmatprep.subr.bf16.mxu0 0
        %1242 = vmatpush1.bf16.msra.mxu0 %v1182
        %1243 = vmatprep.subr.bf16.mxu0 0
        %1244 = vmatpush1.bf16.msra.mxu0 %v1183
        %1245 = vmatprep.subr.bf16.mxu0 0
        %1246 = vmatpush1.bf16.msra.mxu0 %v1184
        %1247 = vmatprep.subr.bf16.mxu0 0
        %1248 = vmatpush1.bf16.msra.mxu0 %v1185
        %1249 = vmatprep.subr.bf16.mxu0 0
        %1250 = vmatpush1.bf16.msra.mxu0 %v1186
        %1251 = vmatprep.mubr.bf16.mxu0 %v1018
        %1252 = vmatmul.mubr.bf16.gmra.mrb[0].mxu0 %v1017
        %v1253 = vpop.f32.mrb[0].mxu0
        %v1254 = vadd.f32 %v1073, %v1253
        %v1255 = vpop.f32.mrb[0].mxu0
        %v1256 = vpop.f32.mrb[0].mxu0
        %v1257 = vadd.f32 %v1073, %v1256
        %v1258 = vpop.f32.mrb[0].mxu0
        %1259 = vdwg.mxu0
        %1260 = vmatprep.subr.bf16.mxu0 0
        %1261 = vmatpush1.bf16.msra.mxu0 %v1187
        %1262 = vmatprep.subr.bf16.mxu0 0
        %1263 = vmatpush1.bf16.msra.mxu0 %v1188
        %1264 = vmatprep.subr.bf16.mxu0 0
        %1265 = vmatpush1.bf16.msra.mxu0 %v1189
        %1266 = vmatprep.subr.bf16.mxu0 0
        %1267 = vmatpush1.bf16.msra.mxu0 %v1190
        %1268 = vmatprep.subr.bf16.mxu0 0
        %1269 = vmatpush1.bf16.msra.mxu0 %v1191
        %1270 = vmatprep.subr.bf16.mxu0 0
        %1271 = vmatpush1.bf16.msra.mxu0 %v1192
        %1272 = vmatprep.subr.bf16.mxu0 0
        %1273 = vmatpush1.bf16.msra.mxu0 %v1193
        %1274 = vmatprep.subr.bf16.mxu0 0
        %1275 = vmatpush1.bf16.msra.mxu0 %v1194
        %1276 = vmatprep.subr.bf16.mxu0 0
        %1277 = vmatpush1.bf16.msra.mxu0 0
        %1278 = vmatprep.subr.bf16.mxu0 0
        %1279 = vmatpush1.bf16.msra.mxu0 0
        %1280 = vmatprep.subr.bf16.mxu0 0
        %1281 = vmatpush1.bf16.msra.mxu0 0
        %1282 = vmatprep.subr.bf16.mxu0 0
        %1283 = vmatpush1.bf16.msra.mxu0 0
        %1284 = vmatprep.subr.bf16.mxu0 0
        %1285 = vmatpush1.bf16.msra.mxu0 0
        %1286 = vmatprep.subr.bf16.mxu0 0
        %1287 = vmatpush1.bf16.msra.mxu0 0
        %1288 = vmatprep.subr.bf16.mxu0 0
        %1289 = vmatpush1.bf16.msra.mxu0 0
        %1290 = vmatprep.subr.bf16.mxu0 0
        %1291 = vmatpush1.bf16.msra.mxu0 0
        %1292 = vmatprep.mubr.bf16.mxu0 0
        %1293 = vmatmul.mubr.bf16.gmra.mrb[0].mxu0 %v1019
        %v1294 = vpop.f32.mrb[0].mxu0
        %v1295 = vadd.f32 %v1254, %v1294
        %v1296 = vpop.f32.mrb[0].mxu0
        %v1297 = vpop.f32.mrb[0].mxu0
        %v1298 = vadd.f32 %v1257, %v1297
        %v1299 = vpop.f32.mrb[0].mxu0
        %1300 = vdwg.mxu0
        %1301 = vst.msk [vmem:[%s324] sm:$0xff] %vm362, %v1295
        %1302 = vst.msk [vmem:[%s324 + $0x8] sm:$0xff] %vm362, %v1298
        %s1303 = smul.u32 2, %s20
        %p1304 = scmp.lt.s32.totalorder %s1303, 3
        %s1305 = scalar_select %p1304, %s1303, 3
        %s1306 = smul.addr %s1305, 8
        %s1307 = scalar_lea.vmem %s7, %s1306
        // Predicated region
        $region61: #{tpu_custom_call.1} parent=47 // pred_check
          %p1308 = pneg %p190
        $region62: #{tpu_custom_call.1} parent=47 // pred_check_branch
          %1310 = sbr.rel (%p1308) target = $region64
        $region63: #{tpu_custom_call.1} parent=47 // pred_region
          %s1311 = smul.u32 2, %s20
        $region64: #{tpu_custom_call.1} parent=47 // pred_fallthru
          _
      $region48: #{tpu_custom_call.1} parent=5 // pred_fallthru
        _
      %p1312 = scmp.le.s32.totalorder 2, %s15
      // Predicated region
      $region65: #{tpu_custom_call.1} parent=5 // pred_check
        %p1313 = pneg %p1312
      $region66: #{tpu_custom_call.1} parent=5 // pred_check_branch
        %1315 = sbr.rel (%p1313) target = $region68
      $region67: #{tpu_custom_call.1} parent=5 // pred_region
        %s1316 = ssub.s32 %s15, 2
        // Predicated region
        $region69: #{tpu_custom_call.1} parent=67 // pred_check
          %p1317 = pneg %p196
        $region70: #{tpu_custom_call.1} parent=67 // pred_check_branch
          %1319 = sbr.rel (%p1317) target = $region72
        $region71: #{tpu_custom_call.1} parent=67 // pred_region
          %s1320 = smul.u32 2, %s21
          %p1321 = scmp.lt.s32.totalorder %s1320, 3
          %s1322 = scalar_select %p1321, %s1320, 3
          %s1323 = smul.addr %s1322, 8
          %s1324 = scalar_lea.vmem %s7, %s1323
        $region72: #{tpu_custom_call.1} parent=67 // pred_fallthru
          _
      $region68: #{tpu_custom_call.1} parent=5 // pred_fallthru
        _
    $region6: #{tpu_custom_call.1} parent=1 // loop_footer
      %s19 = sadd.s32 1, %s15
    $region7: #{tpu_custom_call.1} parent=1 // loop_footer_branch
      %14 = sbr.rel target = $region3
    $region8: #{tpu_custom_call.1} parent=1 // loop_exit
      _
    %1325 = vsyncpa [#allocation4], 1
    %s1326 = scalar_lea.sflag [#allocation4], 1
    %1327 = vsyncpa %s1326, 1
    %1328 = vsyncpa [#allocation6], 1

</llo_original>
